<compile_context>
chip_gen: v5e
topology: v5e:2x2
jax: 0.10.0
libtpu: 0.0.40
codegen_flags: <defaults>
</compile_context>

<pallas_src>
import jax
import jax.numpy as jnp
from jax.experimental import pallas as pl
from jax.experimental.pallas import tpu as pltpu
from typing import NamedTuple

LANE = 128


def _round_up(n, m):
    return ((n + m - 1) // m) * m


def _default_vmem_limit_bytes():
    """Generation-aware scoped-VMEM limit: ~7/8 of physical per-core VMEM."""
    cap = 64 * 1024 * 1024  # conservative default (v7x physical VMEM / core)
    try:
        cap = int(getattr(pltpu.get_tpu_info(), "vmem_capacity_bytes", cap))
    except Exception:
        pass
    return int(min(cap - cap // 8, 112 * 1024 * 1024))


class ResidualBlockParams(NamedTuple):
    wcat: jax.Array   # [fi_p, 2*fo_p]  fused [w1 | ws], matmul dtype
    b1:   jax.Array   # [1, fo_p]       f32
    w2:   jax.Array   # [fo_p, fo_p]    matmul dtype
    bout: jax.Array   # [1, fo_p]       f32, b2 + bs folded
    f_in: int
    f_out: int


def pack_residual_block_params(w1, b1, w2, b2, ws=None, bs=None, *,
                               matmul_dtype=jnp.bfloat16):
    """Pre-pack (pad / fuse / cast) the weights ONCE, outside the hot path.

    Weights are in [in, out] layout (i.e. torch `linear.weight.T`).
    ws/bs may be None when in_features == out_features (nn.Identity skip):
    the skip is then folded in as an identity matrix with zero bias.
    """
    F_in, F_out = w1.shape
    if ws is None:
        assert F_in == F_out, "Identity skip requires in_features == out_features"
        ws = jnp.eye(F_in, dtype=w1.dtype)
    if bs is None:
        bs = jnp.zeros((F_out,), dtype=b1.dtype)

    fi_p = _round_up(F_in, LANE)
    fo_p = _round_up(F_out, LANE)
    pad_i, pad_o = fi_p - F_in, fo_p - F_out

    w1p = jnp.pad(w1, ((0, pad_i), (0, pad_o))).astype(matmul_dtype)
    wsp = jnp.pad(ws, ((0, pad_i), (0, pad_o))).astype(matmul_dtype)
    wcat = jnp.concatenate([w1p, wsp], axis=1)       # fused shared-LHS weight
    w2p = jnp.pad(w2, ((0, pad_o), (0, pad_o))).astype(matmul_dtype)
    b1p = jnp.pad(b1.astype(jnp.float32).reshape(1, F_out), ((0, 0), (0, pad_o)))
    # relu(h@w2 + b2 + x@ws + bs): fold the two post-linear2 biases into one.
    boutp = jnp.pad((b2 + bs).astype(jnp.float32).reshape(1, F_out),
                    ((0, 0), (0, pad_o)))
    return ResidualBlockParams(wcat, b1p, w2p, boutp, F_in, F_out)


def residual_block_kernel(x_ref, wcat_ref, b1_ref, w2_ref, bout_ref, o_ref,
                          h_ref, id_ref):
    n = pl.program_id(1)
    fo_p = h_ref.shape[-1]      # padded F_out (lane-aligned split point)
    tn = o_ref.shape[-1]        # F_out column tile width

    @pl.when(n == 0)
    def _():
        # Fused shared-LHS matmul: [ linear1 | skip ] in a single MXU pass,
        # computed once per batch tile and reused across all N steps.
        z = jnp.dot(x_ref[...], wcat_ref[...],
                    preferred_element_type=jnp.float32)
        h_ref[...] = jnp.maximum(z[:, :fo_p] + b1_ref[...], 0.0).astype(h_ref.dtype)
        id_ref[...] = z[:, fo_p:]            # skip branch, pre-bias (bias folded)

    # dropout -> identity (eval mode)

    col = pl.multiple_of(n * tn, tn)
    out = jnp.dot(h_ref[...], w2_ref[...], preferred_element_type=jnp.float32)
    out = out + id_ref[:, pl.ds(col, tn)] + bout_ref[...]
    o_ref[...] = jnp.maximum(out, 0.0).astype(o_ref.dtype)


def residual_block_apply(x, params, *, batch_tile=256, n_tile=None,
                         out_dtype=None, vmem_limit_bytes=None):
    """ResidualBlock forward (eval mode) on pre-packed params.  x: [B, F_in]."""
    B, F_in = x.shape
    assert F_in == params.f_in
    F_out = params.f_out
    fo_p = params.w2.shape[0]
    fi_p = params.wcat.shape[0]
    matmul_dtype = params.wcat.dtype
    isz = jnp.dtype(matmul_dtype).itemsize
    out_dtype = x.dtype if out_dtype is None else out_dtype
    vmem_limit = (_default_vmem_limit_bytes() if vmem_limit_bytes is None
                  else int(vmem_limit_bytes))

    # ---- F_out (N) tiling: keep w2 resident when it comfortably fits in the
    # VMEM budget, otherwise stream ~512-wide column tiles of w2. --------------
    if n_tile is None:
        weight_bytes = (fi_p * 2 * fo_p + fo_p * fo_p) * isz
        n_tile = fo_p if weight_bytes <= vmem_limit // 4 else 512
    tn = min(_round_up(n_tile, LANE), fo_p)
    tn = (tn // LANE) * LANE
    while fo_p % tn != 0:                      # tn must evenly divide fo_p
        tn -= LANE
    n_steps = fo_p // tn

    # ---- batch tiling ---------------------------------------------------------
    row_align = 8 * (4 // isz)                 # 8 rows (f32) / 16 rows (bf16)
    tb = max(row_align, min(_round_up(batch_tile, row_align),
                            _round_up(B, row_align)))
    # Prefer >=2 grid steps on the parallel batch axis so v7x's second
    # TensorCore gets work (one cheap extra step on v5e/v6e).
    if _round_up(B, tb) // tb < 2 and tb > row_align:
        tb = max(row_align, _round_up(tb // 2, row_align))
    b_p = _round_up(B, tb)
    b_steps = b_p // tb

    xp = jnp.pad(x, ((0, b_p - B), (0, fi_p - F_in))).astype(matmul_dtype)

    w2_passes = 1 if n_steps == 1 else b_steps   # w2 re-streams per batch tile
    cost = pl.CostEstimate(
        flops=int(2 * b_p * fi_p * (2 * fo_p) + 2 * b_p * fo_p * fo_p),
        transcendentals=0,
        bytes_accessed=int(xp.size * isz + params.wcat.size * isz
                           + params.w2.size * isz * w2_passes
                           + params.b1.size * 4 + params.bout.size * 4
                           + b_p * fo_p * jnp.dtype(out_dtype).itemsize),
    )

    def build(single_buffer_weights):
        res = dict(pipeline_mode=pl.Buffered(1)) if single_buffer_weights else {}
        res_n = res if n_steps == 1 else {}      # w2/bout stream when N-tiled
        in_specs = [
            pl.BlockSpec((tb, fi_p), lambda i, n: (i, 0)),                # x
            pl.BlockSpec((fi_p, 2 * fo_p), lambda i, n: (0, 0), **res),   # [w1|ws]
            pl.BlockSpec((1, fo_p), lambda i, n: (0, 0), **res),          # b1
            pl.BlockSpec((fo_p, tn), lambda i, n: (0, n), **res_n),       # w2 tile
            pl.BlockSpec((1, tn), lambda i, n: (0, n), **res_n),          # b2+bs
        ]
        return pl.pallas_call(
            residual_block_kernel,
            out_shape=jax.ShapeDtypeStruct((b_p, fo_p), out_dtype),
            grid=(b_steps, n_steps),
            in_specs=in_specs,
            out_specs=pl.BlockSpec((tb, tn), lambda i, n: (i, n)),
            scratch_shapes=[pltpu.VMEM((tb, fo_p), matmul_dtype),   # h
                            pltpu.VMEM((tb, fo_p), jnp.float32)],   # identity
            compiler_params=pltpu.CompilerParams(
                dimension_semantics=("parallel", "arbitrary"),
                vmem_limit_bytes=vmem_limit),
            cost_estimate=cost,
        )

    args = (xp, params.wcat, params.b1, params.w2, params.bout)
    try:
        out_p = build(True)(*args)
    except Exception:
        # pl.Buffered(1) single-buffering unavailable on this jax/libtpu:
        # fall back to default double-buffered resident weights.
        out_p = build(False)(*args)

    return out_p[:B, :F_out]


def residual_block(x, w1, b1, w2, b2, ws=None, bs=None, *,
                   matmul_dtype=jnp.bfloat16, **apply_kwargs):
    """One-shot convenience wrapper (packs weights per call — prefer
    pack_residual_block_params() + residual_block_apply() in a real loop)."""
    params = pack_residual_block_params(w1, b1, w2, b2, ws, bs,
                                        matmul_dtype=matmul_dtype)
    return residual_block_apply(x, params, **apply_kwargs)


def reference(x, w1, b1, w2, b2, ws, bs):
    identity = x @ ws + bs
    h = jnp.maximum(x @ w1 + b1, 0.0)
    out = h @ w2 + b2
    return jnp.maximum(out + identity, 0.0)


if __name__ == "__main__":
    key = jax.random.PRNGKey(0)
    B, F_in, F_out = 48, 20, 160

    ks = jax.random.split(key, 7)
    lim1 = 1.0 / (F_in ** 0.5)
    lim2 = 1.0 / (F_out ** 0.5)
    x = jax.random.normal(ks[0], (B, F_in), dtype=jnp.float32)
    w1 = jax.random.uniform(ks[1], (F_in, F_out), minval=-lim1, maxval=lim1,
                            dtype=jnp.float32)
    b1 = jax.random.uniform(ks[2], (F_out,), minval=-lim1, maxval=lim1,
                            dtype=jnp.float32)
    w2 = jax.random.uniform(ks[3], (F_out, F_out), minval=-lim2, maxval=lim2,
                            dtype=jnp.float32)
    b2 = jax.random.uniform(ks[4], (F_out,), minval=-lim2, maxval=lim2,
                            dtype=jnp.float32)
    ws = jax.random.uniform(ks[5], (F_in, F_out), minval=-lim1, maxval=lim1,
                            dtype=jnp.float32)
    bs = jax.random.uniform(ks[6], (F_out,), minval=-lim1, maxval=lim1,
                            dtype=jnp.float32)

    ref = reference(x, w1, b1, w2, b2, ws, bs)

    # f32 operand path (near-exact check); weights packed ONCE, applied twice.
    params_f32 = pack_residual_block_params(w1, b1, w2, b2, ws, bs,
                                            matmul_dtype=jnp.float32)
    out = jax.block_until_ready(residual_block_apply(x, params_f32))
    assert out.shape == (B, F_out)
    assert jnp.allclose(out, ref, atol=1e-4, rtol=1e-4)

    # Same packed weights, explicit F_out tiling + small batch tile ->
    # exercises the h/identity VMEM-scratch reuse across multiple N grid steps.
    out_nt = jax.block_until_ready(
        residual_block_apply(x, params_f32, n_tile=128, batch_tile=16))
    assert jnp.allclose(out_nt, ref, atol=1e-4, rtol=1e-4)

    # Default bf16 operand path (full-rate MXU on v5e/v6e/v7x; f32 accumulation).
    params_bf16 = pack_residual_block_params(w1, b1, w2, b2, ws, bs)
    out_bf16 = jax.block_until_ready(residual_block_apply(x, params_bf16))
    assert out_bf16.shape == (B, F_out)
    assert jnp.allclose(out_bf16, ref, atol=5e-2, rtol=5e-2)

    print("KERNEL_OK")
</pallas_src>

<mosaic_0001>
module attributes {stable_mosaic.version = 11 : i64} {
  func.func @residual_block_kernel(%arg0: i32, %arg1: i32, %arg2: memref<24x128xf32, #tpu.memory_space<vmem>>, %arg3: memref<128x512xf32, #tpu.memory_space<vmem>>, %arg4: memref<1x256xf32, #tpu.memory_space<vmem>>, %arg5: memref<256x256xf32, #tpu.memory_space<vmem>>, %arg6: memref<1x256xf32, #tpu.memory_space<vmem>>, %arg7: memref<24x256xf32, #tpu.memory_space<vmem>>, %arg8: memref<24x256xf32, #tpu.memory_space<vmem>>, %arg9: memref<24x256xf32, #tpu.memory_space<vmem>>) attributes {dimension_semantics = [#tpu.dimension_semantics<parallel>, #tpu.dimension_semantics<arbitrary>], iteration_bounds = array<i64: 2, 1>, scalar_prefetch = 0 : i64, scratch_operands = 2 : i64, tpu.core_type = #tpu.core_type<tc>, window_params = [{transform_indices = @transform_0, window_bounds = array<i64: 24, 128>}, {pipeline_mode = #tpu.pipeline_mode<synchronous>, transform_indices = @transform_1, window_bounds = array<i64: 128, 512>}, {pipeline_mode = #tpu.pipeline_mode<synchronous>, transform_indices = @transform_2, window_bounds = array<i64: 1, 256>}, {pipeline_mode = #tpu.pipeline_mode<synchronous>, transform_indices = @transform_3, window_bounds = array<i64: 256, 256>}, {pipeline_mode = #tpu.pipeline_mode<synchronous>, transform_indices = @transform_4, window_bounds = array<i64: 1, 256>}, {transform_indices = @transform_5, window_bounds = array<i64: 24, 256>}]} {
    %c0_i32 = arith.constant 0 : i32
    %0 = arith.cmpi eq, %arg1, %c0_i32 : i32
    %1 = arith.extui %0 : i1 to i32
    %c0_i32_0 = arith.constant 0 : i32
    %2 = arith.cmpi ne, %1, %c0_i32_0 : i32
    scf.if %2 {
      %c0_10 = arith.constant 0 : index
      %c0_11 = arith.constant 0 : index
      %17 = vector.load %arg2[%c0_10, %c0_11] : memref<24x128xf32, #tpu.memory_space<vmem>>, vector<24x128xf32>
      %c0_12 = arith.constant 0 : index
      %c0_13 = arith.constant 0 : index
      %18 = vector.load %arg3[%c0_12, %c0_13] : memref<128x512xf32, #tpu.memory_space<vmem>>, vector<128x512xf32>
      %cst_14 = arith.constant dense<0.000000e+00> : vector<24x512xf32>
      %19 = tpu.matmul %17, %18, %cst_14 {dimension_numbers = #tpu.dot_dimension_numbers<[1], [0], [0], [1], [0, 0, 1, 1], [], []>} : vector<24x128xf32>, vector<128x512xf32>, vector<24x512xf32> -> vector<24x512xf32>
      %20 = vector.extract_strided_slice %19 {offsets = [0, 0], sizes = [24, 256], strides = [1, 1]} : vector<24x512xf32> to vector<24x256xf32>
      %c0_15 = arith.constant 0 : index
      %c0_16 = arith.constant 0 : index
      %21 = vector.load %arg4[%c0_15, %c0_16] : memref<1x256xf32, #tpu.memory_space<vmem>>, vector<1x256xf32>
      %22 = vector.broadcast %21 : vector<1x256xf32> to vector<24x256xf32>
      %23 = arith.addf %20, %22 : vector<24x256xf32>
      %cst_17 = arith.constant 0.000000e+00 : f32
      %24 = vector.broadcast %cst_17 : f32 to vector<24x256xf32>
      %25 = arith.maximumf %23, %24 : vector<24x256xf32>
      %c0_18 = arith.constant 0 : index
      %c0_19 = arith.constant 0 : index
      %26 = vector.load %arg8[%c0_18, %c0_19] : memref<24x256xf32, #tpu.memory_space<vmem>>, vector<24x256xf32>
      tpu.vector_store %arg8[%c0_18, %c0_19], %25 {strides = array<i32>} : memref<24x256xf32, #tpu.memory_space<vmem>>, vector<24x256xf32>,
      %27 = vector.extract_strided_slice %19 {offsets = [0, 256], sizes = [24, 256], strides = [1, 1]} : vector<24x512xf32> to vector<24x256xf32>
      %c0_20 = arith.constant 0 : index
      %c0_21 = arith.constant 0 : index
      %28 = vector.load %arg9[%c0_20, %c0_21] : memref<24x256xf32, #tpu.memory_space<vmem>>, vector<24x256xf32>
      tpu.vector_store %arg9[%c0_20, %c0_21], %27 {strides = array<i32>} : memref<24x256xf32, #tpu.memory_space<vmem>>, vector<24x256xf32>,
    } else {
    }
    %c256_i32 = arith.constant 256 : i32
    %3 = arith.muli %arg1, %c256_i32 : i32
    %4 = tpu.assume_multiple %3, 256 : i32
    %c0 = arith.constant 0 : index
    %c0_1 = arith.constant 0 : index
    %5 = vector.load %arg8[%c0, %c0_1] : memref<24x256xf32, #tpu.memory_space<vmem>>, vector<24x256xf32>
    %c0_2 = arith.constant 0 : index
    %c0_3 = arith.constant 0 : index
    %6 = vector.load %arg5[%c0_2, %c0_3] : memref<256x256xf32, #tpu.memory_space<vmem>>, vector<256x256xf32>
    %cst = arith.constant dense<0.000000e+00> : vector<24x256xf32>
    %7 = tpu.matmul %5, %6, %cst {dimension_numbers = #tpu.dot_dimension_numbers<[1], [0], [0], [1], [0, 0, 1, 1], [], []>} : vector<24x256xf32>, vector<256x256xf32>, vector<24x256xf32> -> vector<24x256xf32>
    %c0_4 = arith.constant 0 : index
    %8 = arith.index_cast %4 : i32 to index
    %9 = vector.load %arg9[%c0_4, %8] : memref<24x256xf32, #tpu.memory_space<vmem>>, vector<24x256xf32>
    %10 = arith.addf %7, %9 : vector<24x256xf32>
    %c0_5 = arith.constant 0 : index
    %c0_6 = arith.constant 0 : index
    %11 = vector.load %arg6[%c0_5, %c0_6] : memref<1x256xf32, #tpu.memory_space<vmem>>, vector<1x256xf32>
    %12 = vector.broadcast %11 : vector<1x256xf32> to vector<24x256xf32>
    %13 = arith.addf %10, %12 : vector<24x256xf32>
    %cst_7 = arith.constant 0.000000e+00 : f32
    %14 = vector.broadcast %cst_7 : f32 to vector<24x256xf32>
    %15 = arith.maximumf %13, %14 : vector<24x256xf32>
    %c0_8 = arith.constant 0 : index
    %c0_9 = arith.constant 0 : index
    %16 = vector.load %arg7[%c0_8, %c0_9] : memref<24x256xf32, #tpu.memory_space<vmem>>, vector<24x256xf32>
    tpu.vector_store %arg7[%c0_8, %c0_9], %15 {strides = array<i32>} : memref<24x256xf32, #tpu.memory_space<vmem>>, vector<24x256xf32>,
    return
  }
  func.func @transform_0(%arg0: i32, %arg1: i32) -> (i32, i32) {
    %c0_i32 = arith.constant 0 : i32
    %c0_i32_0 = arith.constant 0 : i32
    return %arg0, %c0_i32 : i32, i32
  }
  func.func @transform_1(%arg0: i32, %arg1: i32) -> (i32, i32) {
    %c0_i32 = arith.constant 0 : i32
    %c0_i32_0 = arith.constant 0 : i32
    %c0_i32_1 = arith.constant 0 : i32
    return %c0_i32, %c0_i32_0 : i32, i32
  }
  func.func @transform_2(%arg0: i32, %arg1: i32) -> (i32, i32) {
    %c0_i32 = arith.constant 0 : i32
    %c0_i32_0 = arith.constant 0 : i32
    %c0_i32_1 = arith.constant 0 : i32
    return %c0_i32, %c0_i32_0 : i32, i32
  }
  func.func @transform_3(%arg0: i32, %arg1: i32) -> (i32, i32) {
    %c0_i32 = arith.constant 0 : i32
    %c0_i32_0 = arith.constant 0 : i32
    return %c0_i32, %arg1 : i32, i32
  }
  func.func @transform_4(%arg0: i32, %arg1: i32) -> (i32, i32) {
    %c0_i32 = arith.constant 0 : i32
    %c0_i32_0 = arith.constant 0 : i32
    return %c0_i32, %arg1 : i32, i32
  }
  func.func @transform_5(%arg0: i32, %arg1: i32) -> (i32, i32) {
    %c0_i32 = arith.constant 0 : i32
    return %arg0, %arg1 : i32, i32
  }
}

module attributes {stable_mosaic.version = 11 : i64} {
  func.func @residual_block_kernel(%arg0: i32, %arg1: i32, %arg2: memref<24x128xf32, #tpu.memory_space<vmem>>, %arg3: memref<128x512xf32, #tpu.memory_space<vmem>>, %arg4: memref<1x256xf32, #tpu.memory_space<vmem>>, %arg5: memref<256x256xf32, #tpu.memory_space<vmem>>, %arg6: memref<1x256xf32, #tpu.memory_space<vmem>>, %arg7: memref<24x256xf32, #tpu.memory_space<vmem>>, %arg8: memref<24x256xf32, #tpu.memory_space<vmem>>, %arg9: memref<24x256xf32, #tpu.memory_space<vmem>>) attributes {dimension_semantics = [#tpu.dimension_semantics<parallel>, #tpu.dimension_semantics<arbitrary>], iteration_bounds = array<i64: 2, 1>, scalar_prefetch = 0 : i64, scratch_operands = 2 : i64, tpu.core_type = #tpu.core_type<tc>, window_params = [{transform_indices = @transform_0, window_bounds = array<i64: 24, 128>}, {pipeline_mode = #tpu.pipeline_mode<synchronous>, transform_indices = @transform_1, window_bounds = array<i64: 128, 512>}, {pipeline_mode = #tpu.pipeline_mode<synchronous>, transform_indices = @transform_2, window_bounds = array<i64: 1, 256>}, {transform_indices = @transform_3, window_bounds = array<i64: 256, 256>}, {transform_indices = @transform_4, window_bounds = array<i64: 1, 256>}, {transform_indices = @transform_5, window_bounds = array<i64: 24, 256>}]} {
    %c0_i32 = arith.constant 0 : i32
    %0 = arith.cmpi eq, %arg1, %c0_i32 : i32
    %1 = arith.extui %0 : i1 to i32
    %c0_i32_0 = arith.constant 0 : i32
    %2 = arith.cmpi ne, %1, %c0_i32_0 : i32
    scf.if %2 {
      %c0_10 = arith.constant 0 : index
      %c0_11 = arith.constant 0 : index
      %17 = vector.load %arg2[%c0_10, %c0_11] : memref<24x128xf32, #tpu.memory_space<vmem>>, vector<24x128xf32>
      %c0_12 = arith.constant 0 : index
      %c0_13 = arith.constant 0 : index
      %18 = vector.load %arg3[%c0_12, %c0_13] : memref<128x512xf32, #tpu.memory_space<vmem>>, vector<128x512xf32>
      %cst_14 = arith.constant dense<0.000000e+00> : vector<24x512xf32>
      %19 = tpu.matmul %17, %18, %cst_14 {dimension_numbers = #tpu.dot_dimension_numbers<[1], [0], [0], [1], [0, 0, 1, 1], [], []>} : vector<24x128xf32>, vector<128x512xf32>, vector<24x512xf32> -> vector<24x512xf32>
      %20 = vector.extract_strided_slice %19 {offsets = [0, 0], sizes = [24, 256], strides = [1, 1]} : vector<24x512xf32> to vector<24x256xf32>
      %c0_15 = arith.constant 0 : index
      %c0_16 = arith.constant 0 : index
      %21 = vector.load %arg4[%c0_15, %c0_16] : memref<1x256xf32, #tpu.memory_space<vmem>>, vector<1x256xf32>
      %22 = vector.broadcast %21 : vector<1x256xf32> to vector<24x256xf32>
      %23 = arith.addf %20, %22 : vector<24x256xf32>
      %cst_17 = arith.constant 0.000000e+00 : f32
      %24 = vector.broadcast %cst_17 : f32 to vector<24x256xf32>
      %25 = arith.maximumf %23, %24 : vector<24x256xf32>
      %c0_18 = arith.constant 0 : index
      %c0_19 = arith.constant 0 : index
      %26 = vector.load %arg8[%c0_18, %c0_19] : memref<24x256xf32, #tpu.memory_space<vmem>>, vector<24x256xf32>
      tpu.vector_store %arg8[%c0_18, %c0_19], %25 {strides = array<i32>} : memref<24x256xf32, #tpu.memory_space<vmem>>, vector<24x256xf32>,
      %27 = vector.extract_strided_slice %19 {offsets = [0, 256], sizes = [24, 256], strides = [1, 1]} : vector<24x512xf32> to vector<24x256xf32>
      %c0_20 = arith.constant 0 : index
      %c0_21 = arith.constant 0 : index
      %28 = vector.load %arg9[%c0_20, %c0_21] : memref<24x256xf32, #tpu.memory_space<vmem>>, vector<24x256xf32>
      tpu.vector_store %arg9[%c0_20, %c0_21], %27 {strides = array<i32>} : memref<24x256xf32, #tpu.memory_space<vmem>>, vector<24x256xf32>,
    } else {
    }
    %c256_i32 = arith.constant 256 : i32
    %3 = arith.muli %arg1, %c256_i32 : i32
    %4 = tpu.assume_multiple %3, 256 : i32
    %c0 = arith.constant 0 : index
    %c0_1 = arith.constant 0 : index
    %5 = vector.load %arg8[%c0, %c0_1] : memref<24x256xf32, #tpu.memory_space<vmem>>, vector<24x256xf32>
    %c0_2 = arith.constant 0 : index
    %c0_3 = arith.constant 0 : index
    %6 = vector.load %arg5[%c0_2, %c0_3] : memref<256x256xf32, #tpu.memory_space<vmem>>, vector<256x256xf32>
    %cst = arith.constant dense<0.000000e+00> : vector<24x256xf32>
    %7 = tpu.matmul %5, %6, %cst {dimension_numbers = #tpu.dot_dimension_numbers<[1], [0], [0], [1], [0, 0, 1, 1], [], []>} : vector<24x256xf32>, vector<256x256xf32>, vector<24x256xf32> -> vector<24x256xf32>
    %c0_4 = arith.constant 0 : index
    %8 = arith.index_cast %4 : i32 to index
    %9 = vector.load %arg9[%c0_4, %8] : memref<24x256xf32, #tpu.memory_space<vmem>>, vector<24x256xf32>
    %10 = arith.addf %7, %9 : vector<24x256xf32>
    %c0_5 = arith.constant 0 : index
    %c0_6 = arith.constant 0 : index
    %11 = vector.load %arg6[%c0_5, %c0_6] : memref<1x256xf32, #tpu.memory_space<vmem>>, vector<1x256xf32>
    %12 = vector.broadcast %11 : vector<1x256xf32> to vector<24x256xf32>
    %13 = arith.addf %10, %12 : vector<24x256xf32>
    %cst_7 = arith.constant 0.000000e+00 : f32
    %14 = vector.broadcast %cst_7 : f32 to vector<24x256xf32>
    %15 = arith.maximumf %13, %14 : vector<24x256xf32>
    %c0_8 = arith.constant 0 : index
    %c0_9 = arith.constant 0 : index
    %16 = vector.load %arg7[%c0_8, %c0_9] : memref<24x256xf32, #tpu.memory_space<vmem>>, vector<24x256xf32>
    tpu.vector_store %arg7[%c0_8, %c0_9], %15 {strides = array<i32>} : memref<24x256xf32, #tpu.memory_space<vmem>>, vector<24x256xf32>,
    return
  }
  func.func @transform_0(%arg0: i32, %arg1: i32) -> (i32, i32) {
    %c0_i32 = arith.constant 0 : i32
    %c0_i32_0 = arith.constant 0 : i32
    return %arg0, %c0_i32 : i32, i32
  }
  func.func @transform_1(%arg0: i32, %arg1: i32) -> (i32, i32) {
    %c0_i32 = arith.constant 0 : i32
    %c0_i32_0 = arith.constant 0 : i32
    %c0_i32_1 = arith.constant 0 : i32
    return %c0_i32, %c0_i32_0 : i32, i32
  }
  func.func @transform_2(%arg0: i32, %arg1: i32) -> (i32, i32) {
    %c0_i32 = arith.constant 0 : i32
    %c0_i32_0 = arith.constant 0 : i32
    %c0_i32_1 = arith.constant 0 : i32
    return %c0_i32, %c0_i32_0 : i32, i32
  }
  func.func @transform_3(%arg0: i32, %arg1: i32) -> (i32, i32) {
    %c0_i32 = arith.constant 0 : i32
    %c0_i32_0 = arith.constant 0 : i32
    return %c0_i32, %arg1 : i32, i32
  }
  func.func @transform_4(%arg0: i32, %arg1: i32) -> (i32, i32) {
    %c0_i32 = arith.constant 0 : i32
    %c0_i32_0 = arith.constant 0 : i32
    return %c0_i32, %arg1 : i32, i32
  }
  func.func @transform_5(%arg0: i32, %arg1: i32) -> (i32, i32) {
    %c0_i32 = arith.constant 0 : i32
    return %arg0, %arg1 : i32, i32
  }
}

</mosaic_0001>

<llo_original>
// kernel: tpu_custom_call.1
$region0: #{tpu_custom_call.1}
  #allocation0 [shape = 'u32[]', space=smem, size = 0x4, offset = 0x4, fixed_abs, tag = 'smem constant byte address 0x4 - core index']
  #allocation1 [shape = 'u32[72,128]{1,0:T(1,128)}', space=vmem, size = 0x9000, scoped, tag = 'internal scratch']
  #allocation2 [shape = 'f32[24,256]{1,0:T(8,128)}', space=vmem, size = 0x6000, scoped, tag = 'scratch operand']
  #allocation3 [shape = 'f32[24,256]{1,0:T(8,128)}', space=vmem, size = 0x6000, scoped, tag = 'scratch operand']
  %s0 = inlined_call_operand.hbm [shape: f32[48,128], index: 0, kind: input, shape index: {}]
  %s1 = inlined_call_operand.hbm [shape: f32[128,512], index: 1, kind: input, shape index: {}]
  %s2 = inlined_call_operand.hbm [shape: f32[1,256], index: 2, kind: input, shape index: {}]
  %s3 = inlined_call_operand.hbm [shape: f32[256,256], index: 3, kind: input, shape index: {}]
  %s4 = inlined_call_operand.vmem [shape: f32[1,256], index: 4, kind: input, shape index: {}]
  %s5 = inlined_call_operand.hbm [shape: f32[48,256], index: 5, kind: output, shape index: {}]
  %s6 = sld [smem:[#allocation0]]
  $region73: #{tpu_custom_call.1} parent=0
    _
  %s8 = ssub.s32 1, %s6
  %s9 = scalar_select 0, %s8, %s6
  $region1: #{tpu_custom_call.1} parent=0
    #allocation4 [shape = 'u8[24576]{0}', space=vmem, size = 0x6000, scoped, tag = 'input window, operand 0']
    #allocation5 [shape = 's32[2]{0}', space=sflag, size = 0x8, scoped, tag = 'scoped memory for tpu_custom_call.1']
    #allocation6 [shape = 's32[2]{0}', space=sflag, size = 0x8, scoped, tag = 'scoped memory for tpu_custom_call.1']
    #allocation7 [shape = 'u8[262144]{0}', space=vmem, size = 0x40000, scoped, tag = 'input window, operand 1, single buffered']
    #allocation8 [shape = 's32[1]{0}', space=sflag, size = 0x4, scoped, tag = 'scoped memory for tpu_custom_call.1']
    #allocation9 [shape = 'u8[1024]{0}', space=vmem, size = 0x400, scoped, tag = 'input window, operand 2, single buffered']
    #allocation10 [shape = 'u8[262144]{0}', space=vmem, size = 0x40000, scoped, tag = 'input window, operand 3, single buffered']
    #allocation11 [shape = 's32[1]{0}', space=sflag, size = 0x4, scoped, tag = 'scoped memory for tpu_custom_call.1']
    #allocation12 [shape = 'u8[49152]{0}', space=vmem, size = 0xc000, scoped, tag = 'output window, operand 0']
    %10 = vsyncpa [#allocation5], 0
    %s11 = scalar_lea.sflag [#allocation5], 1
    %12 = vsyncpa %s11, 0
    %13 = vsyncpa [#allocation8], 0
    %14 = vsyncpa [#allocation11], 0
    %15 = vsyncpa [#allocation6], 0
    %s16 = scalar_lea.sflag [#allocation6], 1
    %17 = vsyncpa %s16, 0
    loop: start=0, step=1, limit=4
    $region2: #{tpu_custom_call.1} parent=1 // loop_pre_header
      _
    $region3: #{tpu_custom_call.1} parent=1 // loop_header
      %s19 = sphi 0, %s23
      %p20 = scmp.ge.s32.totalorder %s19, 4
      %s26 = sphi 0, %s38
      %s27 = sphi 0, %s34
      %s28 = sphi 0, %s26
      %s29 = sphi 0, %s27
      %s30 = sphi 0, %s28
      %s31 = sphi 0, %s29
      %s41 = sphi 0, %s43
      %s44 = sphi 0, %s41
      %s45 = sphi 0, %s44
      %s61 = sphi 0, %s45
      %s65 = sphi 0, %s65
      %s67 = sphi 0, %s65
      %s68 = sphi 0, %s67
      %s82 = sphi 0, %s68
      %s86 = sphi 0, %s86
      %s88 = sphi 0, %s86
      %s89 = sphi 0, %s88
      %s103 = sphi 0, %s89
      %s109 = sphi 0, %s111
      %s112 = sphi 0, %s109
      %s113 = sphi 0, %s112
      %s129 = sphi 0, %s113
      %s135 = sphi 0, %s137
      %s138 = sphi 0, %s135
      %s139 = sphi 0, %s138
      %s155 = sphi 0, %s139
      %s163 = sphi 0, %s165
      %s166 = sphi 0, %s163
      %s167 = sphi 0, %s166
      %s183 = sphi 0, %s167
    $region4: #{tpu_custom_call.1} parent=1 // loop_header_branch
      %22 = sbr.rel (%p20) target = $region8
    $region5: #{tpu_custom_call.1} parent=1 // loop_body
      %s24 = ssub.s32 %s19, 1
      %s25 = ssub.s32 %s19, 2
      %s32 = sadd.s32 1, %s27
      %p33 = scmp.ge.s32.totalorder %s32, 1
      %s34 = scalar_select %p33, 0, %s32
      %s35 = sadd.s32 1, %s26
      %s36 = scalar_select %p33, %s35, %s26
      %p37 = scmp.ge.s32.totalorder %s36, 2
      %s38 = scalar_select %p37, 0, %s36
      %s39 = ssub.s32 %s26, %s38
      %p40 = scmp.eq.s32.totalorder %s39, 0
      %s42 = sadd.s32 %s41, 1
      %s43 = scalar_select %p40, %s41, %s42
      %p46 = pneg %p40
      %p47 = scmp.eq.s32.totalorder %s19, 1
      %p48 = por %p46, %p47
      %p49 = scmp.ne.s32.totalorder %s41, %s44
      %p50 = scmp.eq.s32.totalorder %s19, 0
      %p51 = por %p49, %p50
      %p52 = scmp.ne.s32.totalorder %s41, %s44
      %p53 = scmp.eq.s32.totalorder %s24, 1
      %p54 = por %p52, %p53
      %p55 = scmp.ne.s32.totalorder %s44, %s45
      %p56 = scmp.eq.s32.totalorder %s24, 0
      %p57 = por %p55, %p56
      %p58 = scmp.ne.s32.totalorder %s44, %s45
      %p59 = scmp.eq.s32.totalorder %s25, 1
      %p60 = por %p58, %p59
      %p62 = scmp.ne.s32.totalorder %s45, %s61
      %p63 = scmp.eq.s32.totalorder %s25, 0
      %p64 = por %p62, %p63
      %s66 = sadd.s32 %s65, 1
      %p69 = scmp.eq.s32.totalorder %s19, 1
      %p70 = scmp.ne.s32.totalorder %s65, %s67
      %p71 = scmp.eq.s32.totalorder %s19, 0
      %p72 = por %p70, %p71
      %p73 = scmp.ne.s32.totalorder %s65, %s67
      %p74 = scmp.eq.s32.totalorder %s24, 1
      %p75 = por %p73, %p74
      %p76 = scmp.ne.s32.totalorder %s67, %s68
      %p77 = scmp.eq.s32.totalorder %s24, 0
      %p78 = por %p76, %p77
      %p79 = scmp.ne.s32.totalorder %s67, %s68
      %p80 = scmp.eq.s32.totalorder %s25, 1
      %p81 = por %p79, %p80
      %p83 = scmp.ne.s32.totalorder %s68, %s82
      %p84 = scmp.eq.s32.totalorder %s25, 0
      %p85 = por %p83, %p84
      %s87 = sadd.s32 %s86, 1
      %p90 = scmp.eq.s32.totalorder %s19, 1
      %p91 = scmp.ne.s32.totalorder %s86, %s88
      %p92 = scmp.eq.s32.totalorder %s19, 0
      %p93 = por %p91, %p92
      %p94 = scmp.ne.s32.totalorder %s86, %s88
      %p95 = scmp.eq.s32.totalorder %s24, 1
      %p96 = por %p94, %p95
      %p97 = scmp.ne.s32.totalorder %s88, %s89
      %p98 = scmp.eq.s32.totalorder %s24, 0
      %p99 = por %p97, %p98
      %p100 = scmp.ne.s32.totalorder %s88, %s89
      %p101 = scmp.eq.s32.totalorder %s25, 1
      %p102 = por %p100, %p101
      %p104 = scmp.ne.s32.totalorder %s89, %s103
      %p105 = scmp.eq.s32.totalorder %s25, 0
      %p106 = por %p104, %p105
      %s107 = ssub.s32 %s27, %s34
      %p108 = scmp.eq.s32.totalorder %s107, 0
      %s110 = sadd.s32 %s109, 1
      %s111 = scalar_select %p108, %s109, %s110
      %p114 = pneg %p108
      %p115 = scmp.eq.s32.totalorder %s19, 1
      %p116 = por %p114, %p115
      %p117 = scmp.ne.s32.totalorder %s109, %s112
      %p118 = scmp.eq.s32.totalorder %s19, 0
      %p119 = por %p117, %p118
      %p120 = scmp.ne.s32.totalorder %s109, %s112
      %p121 = scmp.eq.s32.totalorder %s24, 1
      %p122 = por %p120, %p121
      %p123 = scmp.ne.s32.totalorder %s112, %s113
      %p124 = scmp.eq.s32.totalorder %s24, 0
      %p125 = por %p123, %p124
      %p126 = scmp.ne.s32.totalorder %s112, %s113
      %p127 = scmp.eq.s32.totalorder %s25, 1
      %p128 = por %p126, %p127
      %p130 = scmp.ne.s32.totalorder %s113, %s129
      %p131 = scmp.eq.s32.totalorder %s25, 0
      %p132 = por %p130, %p131
      %s133 = ssub.s32 %s27, %s34
      %p134 = scmp.eq.s32.totalorder %s133, 0
      %s136 = sadd.s32 %s135, 1
      %s137 = scalar_select %p134, %s135, %s136
      %p140 = pneg %p134
      %p141 = scmp.eq.s32.totalorder %s19, 1
      %p142 = por %p140, %p141
      %p143 = scmp.ne.s32.totalorder %s135, %s138
      %p144 = scmp.eq.s32.totalorder %s19, 0
      %p145 = por %p143, %p144
      %p146 = scmp.ne.s32.totalorder %s135, %s138
      %p147 = scmp.eq.s32.totalorder %s24, 1
      %p148 = por %p146, %p147
      %p149 = scmp.ne.s32.totalorder %s138, %s139
      %p150 = scmp.eq.s32.totalorder %s24, 0
      %p151 = por %p149, %p150
      %p152 = scmp.ne.s32.totalorder %s138, %s139
      %p153 = scmp.eq.s32.totalorder %s25, 1
      %p154 = por %p152, %p153
      %p156 = scmp.ne.s32.totalorder %s139, %s155
      %p157 = scmp.eq.s32.totalorder %s25, 0
      %p158 = por %p156, %p157
      %s159 = ssub.s32 %s26, %s38
      %s160 = ssub.s32 %s27, %s34
      %s161 = sor.u32 %s159, %s160
      %p162 = scmp.eq.s32.totalorder %s161, 0
      %s164 = sadd.s32 %s163, 1
      %s165 = scalar_select %p162, %s163, %s164
      %p168 = pneg %p162
      %p169 = scmp.eq.s32.totalorder %s19, 1
      %p170 = por %p168, %p169
      %p171 = scmp.ne.s32.totalorder %s163, %s166
      %p172 = scmp.eq.s32.totalorder %s19, 0
      %p173 = por %p171, %p172
      %p174 = scmp.ne.s32.totalorder %s163, %s166
      %p175 = scmp.eq.s32.totalorder %s24, 1
      %p176 = por %p174, %p175
      %p177 = scmp.ne.s32.totalorder %s166, %s167
      %p178 = scmp.eq.s32.totalorder %s24, 0
      %p179 = por %p177, %p178
      %p180 = scmp.ne.s32.totalorder %s166, %s167
      %p181 = scmp.eq.s32.totalorder %s25, 1
      %p182 = por %p180, %p181
      %p184 = scmp.ne.s32.totalorder %s167, %s183
      %p185 = scmp.eq.s32.totalorder %s25, 0
      %p186 = por %p184, %p185
      %p187 = scmp.le.s32.totalorder 1, %s19
      %p188 = scmp.lt.s32.totalorder %s19, 3
      %p189 = pnand %p187, %p188
      %p190 = pneg %p189
      // Predicated region
      $region9: #{tpu_custom_call.1} parent=5 // pred_check
        _
      $region10: #{tpu_custom_call.1} parent=5 // pred_check_branch
        %192 = sbr.rel (%p189) target = $region12
      $region11: #{tpu_custom_call.1} parent=5 // pred_region
        %s193 = ssub.s32 %s19, 1
        // Predicated region
        $region13: #{tpu_custom_call.1} parent=11 // pred_check
          %p194 = pneg %p78
        $region14: #{tpu_custom_call.1} parent=11 // pred_check_branch
          %196 = sbr.rel (%p194) target = $region16
        $region15: #{tpu_custom_call.1} parent=11 // pred_region
          %198 = vsyncadd [#allocation8], 0
          %s199 = sshll.u32 %s1, 4
          %s200 = int_to_ptr.hbm [resolvable:$true] %s199
          %s201 = sshll.u32 [#allocation7], 4
          %s202 = int_to_ptr.vmem [resolvable:$true] %s201
          %207 = dma.hbm_to_vmem [thread:$0]  %s200, 8192, %s202, [#allocation8], 512, 512, 32
        $region16: #{tpu_custom_call.1} parent=11 // pred_fallthru
          _
        // Predicated region
        $region17: #{tpu_custom_call.1} parent=11 // pred_check
          %p208 = pneg %p99
        $region18: #{tpu_custom_call.1} parent=11 // pred_check_branch
          %210 = sbr.rel (%p208) target = $region20
        $region19: #{tpu_custom_call.1} parent=11 // pred_region
          %212 = vsyncadd [#allocation8], 0
          %s214 = sshll.u32 %s2, 4
          %s215 = int_to_ptr.hbm [resolvable:$true] %s214
          %s216 = sshll.u32 [#allocation9], 4
          %s217 = int_to_ptr.vmem [resolvable:$true] %s216
          %219 = dma.hbm_to_vmem [thread:$0]  %s215, 32, %s217, [#allocation8]
        $region20: #{tpu_custom_call.1} parent=11 // pred_fallthru
          _
        // Predicated region
        $region21: #{tpu_custom_call.1} parent=11 // pred_check
          %p220 = pneg %p125
        $region22: #{tpu_custom_call.1} parent=11 // pred_check_branch
          %222 = sbr.rel (%p220) target = $region24
        $region23: #{tpu_custom_call.1} parent=11 // pred_region
          %s223 = smul.u32 2, %s29
          %225 = vsyncadd [#allocation11], 0
          %s226 = smul.addr %s223, 8
          %s227 = scalar_lea.hbm %s3, %s226
          %s228 = sshll.u32 %s227, 4
          %s229 = int_to_ptr.hbm [resolvable:$true] %s228
          %s230 = sshll.u32 [#allocation10], 4
          %s231 = int_to_ptr.vmem [resolvable:$true] %s230
          %236 = dma.hbm_to_vmem [thread:$0]  %s229, 8192, %s231, [#allocation11], 256, 256, 16
        $region24: #{tpu_custom_call.1} parent=11 // pred_fallthru
          _
        // Predicated region
        $region25: #{tpu_custom_call.1} parent=11 // pred_check
          %p237 = pneg %p151
        $region26: #{tpu_custom_call.1} parent=11 // pred_check_branch
          %239 = sbr.rel (%p237) target = $region28
        $region27: #{tpu_custom_call.1} parent=11 // pred_region
          %s240 = smul.u32 2, %s29
          %p241 = scmp.lt.s32.totalorder %s240, 1
          %s242 = scalar_select %p241, %s240, 1
          %s243 = scalar_lea.vmem %s4, %s242
          %s244 = smul.u32 2, %s29
        $region28: #{tpu_custom_call.1} parent=11 // pred_fallthru
          _
      $region12: #{tpu_custom_call.1} parent=5 // pred_fallthru
        _
      %p245 = scmp.lt.s32.totalorder %s19, 2
      // Predicated region
      $region29: #{tpu_custom_call.1} parent=5 // pred_check
        %p246 = pneg %p245
      $region30: #{tpu_custom_call.1} parent=5 // pred_check_branch
        %248 = sbr.rel (%p246) target = $region32
      $region31: #{tpu_custom_call.1} parent=5 // pred_region
        // Predicated region
        $region33: #{tpu_custom_call.1} parent=31 // pred_check
          %p249 = pneg %p51
        $region34: #{tpu_custom_call.1} parent=31 // pred_check_branch
          %251 = sbr.rel (%p249) target = $region36
        $region35: #{tpu_custom_call.1} parent=31 // pred_region
          %s252 = sand.u32 %s41, 1
          %s253 = scalar_lea.sflag [#allocation5], %s252
          %s254 = sand.u32 %s41, 1
          %s255 = smul.addr %s254, 24
          %s256 = scalar_lea.vmem [#allocation4], %s255
          %s257 = smul.u32 3, %s26
          %259 = vsyncadd %s253, 0
          %s260 = smul.addr %s257, 8
          %s261 = scalar_lea.hbm %s0, %s260
          %s262 = sshll.u32 %s261, 4
          %s263 = int_to_ptr.hbm [resolvable:$true] %s262
          %s264 = sshll.u32 %s256, 4
          %s265 = int_to_ptr.vmem [resolvable:$true] %s264
          %270 = dma.hbm_to_vmem [thread:$0]  %s263, 384, %s265, %s253, 128, 128, 8
        $region36: #{tpu_custom_call.1} parent=31 // pred_fallthru
          _
      $region32: #{tpu_custom_call.1} parent=5 // pred_fallthru
        _
      %p271 = scmp.le.s32.totalorder 1, %s19
      %p272 = scmp.lt.s32.totalorder %s19, 3
      %p273 = pnand %p271, %p272
      %p274 = pneg %p273
      // Predicated region
      $region37: #{tpu_custom_call.1} parent=5 // pred_check
        _
      $region38: #{tpu_custom_call.1} parent=5 // pred_check_branch
        %276 = sbr.rel (%p273) target = $region40
      $region39: #{tpu_custom_call.1} parent=5 // pred_region
        %s277 = ssub.s32 %s19, 1
        %s278 = sand.u32 %s44, 1
        %s279 = scalar_lea.sflag [#allocation5], %s278
        %s280 = sand.u32 %s44, 1
        %s281 = smul.addr %s280, 24
        %s282 = scalar_lea.vmem [#allocation4], %s281
        // Predicated region
        $region41: #{tpu_custom_call.1} parent=39 // pred_check
          %p283 = pneg %p57
        $region42: #{tpu_custom_call.1} parent=39 // pred_check_branch
          %285 = sbr.rel (%p283) target = $region44
        $region43: #{tpu_custom_call.1} parent=39 // pred_region
          %287 = dma.done %s279, 384
        $region44: #{tpu_custom_call.1} parent=39 // pred_fallthru
          _
        // Predicated region
        $region45: #{tpu_custom_call.1} parent=39 // pred_check
          %p288 = pneg %p78
        $region46: #{tpu_custom_call.1} parent=39 // pred_check_branch
          %290 = sbr.rel (%p288) target = $region48
        $region47: #{tpu_custom_call.1} parent=39 // pred_region
          %292 = dma.done [#allocation8], 8192
        $region48: #{tpu_custom_call.1} parent=39 // pred_fallthru
          _
        // Predicated region
        $region49: #{tpu_custom_call.1} parent=39 // pred_check
          %p293 = pneg %p99
        $region50: #{tpu_custom_call.1} parent=39 // pred_check_branch
          %295 = sbr.rel (%p293) target = $region52
        $region51: #{tpu_custom_call.1} parent=39 // pred_region
          %297 = dma.done [#allocation8], 32
        $region52: #{tpu_custom_call.1} parent=39 // pred_fallthru
          _
        // Predicated region
        $region53: #{tpu_custom_call.1} parent=39 // pred_check
          %p298 = pneg %p125
        $region54: #{tpu_custom_call.1} parent=39 // pred_check_branch
          %300 = sbr.rel (%p298) target = $region56
        $region55: #{tpu_custom_call.1} parent=39 // pred_region
          %302 = dma.done [#allocation11], 8192
        $region56: #{tpu_custom_call.1} parent=39 // pred_fallthru
          _
        %s303 = sand.u32 %s44, 1
        %s304 = scalar_lea.sflag [#allocation5], %s303
        %s305 = sand.u32 %s44, 1
        %s306 = smul.addr %s305, 24
        %s307 = scalar_lea.vmem [#allocation4], %s306
        %p308 = pneg %p57
        %p309 = pneg %p54
        %p310 = pneg %p78
        %p311 = pneg %p75
        %p312 = pneg %p99
        %p313 = pneg %p96
        %p314 = pneg %p125
        %p315 = pneg %p122
        %s316 = smul.u32 2, %s29
        %p317 = scmp.lt.s32.totalorder %s316, 1
        %s318 = scalar_select %p317, %s316, 1
        %s319 = scalar_lea.vmem %s4, %s318
        %p320 = pneg %p151
        %p321 = pneg %p148
        %p322 = pneg %p179
        %p323 = pneg %p176
        %s324 = sand.u32 %s166, 1
        %s325 = scalar_lea.sflag [#allocation6], %s324
        %s326 = sand.u32 %s166, 1
        %s327 = smul.addr %s326, 48
        %s328 = scalar_lea.vmem [#allocation12], %s327
        %s329 = smul.u32 3, %s28
        %s330 = smul.u32 2, %s29
        %s331 = smul.u32 2, %s29
        %p332 = scmp.lt.s32.totalorder %s331, 1
        %s333 = scalar_select %p332, %s331, 1
        %s334 = scalar_lea.vmem %s4, %s333
        %s335 = smul.u32 2, %s29
        %s336 = smul.u32 3, %s28
        %s337 = smul.u32 2, %s29
        %p338 = scmp.eq.s32.totalorder %s29, 0
        // Predicated region
        $region57: #{tpu_custom_call.1} parent=39 // pred_check
          %p339 = pneg %p338
        $region58: #{tpu_custom_call.1} parent=39 // pred_check_branch
          %341 = sbr.rel (%p339) target = $region60
        $region59: #{tpu_custom_call.1} parent=39 // pred_region
          %v342 = vld [vmem:[%s282] sm:$0xff]
          %v343 = vld [vmem:[%s282 + $0x8] sm:$0xff]
          %v344 = vld [vmem:[%s282 + $0x10] sm:$0xff]
          %v345 = vld [vmem:[#allocation7] sm:$0xff]
          %v346 = vld [vmem:[#allocation7 + $0x8] sm:$0xff]
          %v347 = vld [vmem:[#allocation7 + $0x10] sm:$0xff]
          %v348 = vld [vmem:[#allocation7 + $0x18] sm:$0xff]
          %v349 = vld [vmem:[#allocation7 + $0x20] sm:$0xff]
          %v350 = vld [vmem:[#allocation7 + $0x28] sm:$0xff]
          %v351 = vld [vmem:[#allocation7 + $0x30] sm:$0xff]
          %v352 = vld [vmem:[#allocation7 + $0x38] sm:$0xff]
          %v353 = vld [vmem:[#allocation7 + $0x40] sm:$0xff]
          %v354 = vld [vmem:[#allocation7 + $0x48] sm:$0xff]
          %v355 = vld [vmem:[#allocation7 + $0x50] sm:$0xff]
          %v356 = vld [vmem:[#allocation7 + $0x58] sm:$0xff]
          %v357 = vld [vmem:[#allocation7 + $0x60] sm:$0xff]
          %v358 = vld [vmem:[#allocation7 + $0x68] sm:$0xff]
          %v359 = vld [vmem:[#allocation7 + $0x70] sm:$0xff]
          %v360 = vld [vmem:[#allocation7 + $0x78] sm:$0xff]
          %v361 = vld [vmem:[#allocation7 + $0x80] sm:$0xff]
          %v362 = vld [vmem:[#allocation7 + $0x88] sm:$0xff]
          %v363 = vld [vmem:[#allocation7 + $0x90] sm:$0xff]
          %v364 = vld [vmem:[#allocation7 + $0x98] sm:$0xff]
          %v365 = vld [vmem:[#allocation7 + $0xa0] sm:$0xff]
          %v366 = vld [vmem:[#allocation7 + $0xa8] sm:$0xff]
          %v367 = vld [vmem:[#allocation7 + $0xb0] sm:$0xff]
          %v368 = vld [vmem:[#allocation7 + $0xb8] sm:$0xff]
          %v369 = vld [vmem:[#allocation7 + $0xc0] sm:$0xff]
          %v370 = vld [vmem:[#allocation7 + $0xc8] sm:$0xff]
          %v371 = vld [vmem:[#allocation7 + $0xd0] sm:$0xff]
          %v372 = vld [vmem:[#allocation7 + $0xd8] sm:$0xff]
          %v373 = vld [vmem:[#allocation7 + $0xe0] sm:$0xff]
          %v374 = vld [vmem:[#allocation7 + $0xe8] sm:$0xff]
          %v375 = vld [vmem:[#allocation7 + $0xf0] sm:$0xff]
          %v376 = vld [vmem:[#allocation7 + $0xf8] sm:$0xff]
          %v377 = vld [vmem:[#allocation7 + $0x100] sm:$0xff]
          %v378 = vld [vmem:[#allocation7 + $0x108] sm:$0xff]
          %v379 = vld [vmem:[#allocation7 + $0x110] sm:$0xff]
          %v380 = vld [vmem:[#allocation7 + $0x118] sm:$0xff]
          %v381 = vld [vmem:[#allocation7 + $0x120] sm:$0xff]
          %v382 = vld [vmem:[#allocation7 + $0x128] sm:$0xff]
          %v383 = vld [vmem:[#allocation7 + $0x130] sm:$0xff]
          %v384 = vld [vmem:[#allocation7 + $0x138] sm:$0xff]
          %v385 = vld [vmem:[#allocation7 + $0x140] sm:$0xff]
          %v386 = vld [vmem:[#allocation7 + $0x148] sm:$0xff]
          %v387 = vld [vmem:[#allocation7 + $0x150] sm:$0xff]
          %v388 = vld [vmem:[#allocation7 + $0x158] sm:$0xff]
          %v389 = vld [vmem:[#allocation7 + $0x160] sm:$0xff]
          %v390 = vld [vmem:[#allocation7 + $0x168] sm:$0xff]
          %v391 = vld [vmem:[#allocation7 + $0x170] sm:$0xff]
          %v392 = vld [vmem:[#allocation7 + $0x178] sm:$0xff]
          %v393 = vld [vmem:[#allocation7 + $0x180] sm:$0xff]
          %v394 = vld [vmem:[#allocation7 + $0x188] sm:$0xff]
          %v395 = vld [vmem:[#allocation7 + $0x190] sm:$0xff]
          %v396 = vld [vmem:[#allocation7 + $0x198] sm:$0xff]
          %v397 = vld [vmem:[#allocation7 + $0x1a0] sm:$0xff]
          %v398 = vld [vmem:[#allocation7 + $0x1a8] sm:$0xff]
          %v399 = vld [vmem:[#allocation7 + $0x1b0] sm:$0xff]
          %v400 = vld [vmem:[#allocation7 + $0x1b8] sm:$0xff]
          %v401 = vld [vmem:[#allocation7 + $0x1c0] sm:$0xff]
          %v402 = vld [vmem:[#allocation7 + $0x1c8] sm:$0xff]
          %v403 = vld [vmem:[#allocation7 + $0x1d0] sm:$0xff]
          %v404 = vld [vmem:[#allocation7 + $0x1d8] sm:$0xff]
          %v405 = vld [vmem:[#allocation7 + $0x1e0] sm:$0xff]
          %v406 = vld [vmem:[#allocation7 + $0x1e8] sm:$0xff]
          %v407 = vld [vmem:[#allocation7 + $0x1f0] sm:$0xff]
          %v408 = vld [vmem:[#allocation7 + $0x1f8] sm:$0xff]
          %409 = vmatpush.msra.mxu0 %v405
          %410 = vmatpush.msra.mxu0 %v401
          %411 = vmatpush.msra.mxu0 %v397
          %412 = vmatpush.msra.mxu0 %v393
          %413 = vmatpush.msra.mxu0 %v389
          %414 = vmatpush.msra.mxu0 %v385
          %415 = vmatpush.msra.mxu0 %v381
          %416 = vmatpush.msra.mxu0 %v377
          %417 = vmatpush.msra.mxu0 %v373
          %418 = vmatpush.msra.mxu0 %v369
          %419 = vmatpush.msra.mxu0 %v365
          %420 = vmatpush.msra.mxu0 %v361
          %421 = vmatpush.msra.mxu0 %v357
          %422 = vmatpush.msra.mxu0 %v353
          %423 = vmatpush.msra.mxu0 %v349
          %424 = vmatpush.msra.mxu0 %v345
          %425 = vmatmul.f32.gmra.mxu0 %v342
          %v426 = vpop.f32.mrf.mxu0
          %v427 = vadd.f32 0.0, %v426
          %428 = vmatmul.f32.gmra.mxu0 %v343
          %v429 = vpop.f32.mrf.mxu0
          %v430 = vadd.f32 0.0, %v429
          %431 = vmatmul.f32.gmra.mxu0 %v344
          %v432 = vpop.f32.mrf.mxu0
          %v433 = vadd.f32 0.0, %v432
          %434 = vdwg.mxu0
          %435 = vmatpush.msra.mxu0 %v406
          %436 = vmatpush.msra.mxu0 %v402
          %437 = vmatpush.msra.mxu0 %v398
          %438 = vmatpush.msra.mxu0 %v394
          %439 = vmatpush.msra.mxu0 %v390
          %440 = vmatpush.msra.mxu0 %v386
          %441 = vmatpush.msra.mxu0 %v382
          %442 = vmatpush.msra.mxu0 %v378
          %443 = vmatpush.msra.mxu0 %v374
          %444 = vmatpush.msra.mxu0 %v370
          %445 = vmatpush.msra.mxu0 %v366
          %446 = vmatpush.msra.mxu0 %v362
          %447 = vmatpush.msra.mxu0 %v358
          %448 = vmatpush.msra.mxu0 %v354
          %449 = vmatpush.msra.mxu0 %v350
          %450 = vmatpush.msra.mxu0 %v346
          %451 = vmatmul.f32.gmra.mxu0 %v342
          %v452 = vpop.f32.mrf.mxu0
          %v453 = vadd.f32 0.0, %v452
          %454 = vmatmul.f32.gmra.mxu0 %v343
          %v455 = vpop.f32.mrf.mxu0
          %v456 = vadd.f32 0.0, %v455
          %457 = vmatmul.f32.gmra.mxu0 %v344
          %v458 = vpop.f32.mrf.mxu0
          %v459 = vadd.f32 0.0, %v458
          %460 = vdwg.mxu0
          %461 = vmatpush.msra.mxu0 %v407
          %462 = vmatpush.msra.mxu0 %v403
          %463 = vmatpush.msra.mxu0 %v399
          %464 = vmatpush.msra.mxu0 %v395
          %465 = vmatpush.msra.mxu0 %v391
          %466 = vmatpush.msra.mxu0 %v387
          %467 = vmatpush.msra.mxu0 %v383
          %468 = vmatpush.msra.mxu0 %v379
          %469 = vmatpush.msra.mxu0 %v375
          %470 = vmatpush.msra.mxu0 %v371
          %471 = vmatpush.msra.mxu0 %v367
          %472 = vmatpush.msra.mxu0 %v363
          %473 = vmatpush.msra.mxu0 %v359
          %474 = vmatpush.msra.mxu0 %v355
          %475 = vmatpush.msra.mxu0 %v351
          %476 = vmatpush.msra.mxu0 %v347
          %477 = vmatmul.f32.gmra.mxu0 %v342
          %v478 = vpop.f32.mrf.mxu0
          %v479 = vadd.f32 0.0, %v478
          %480 = vmatmul.f32.gmra.mxu0 %v343
          %v481 = vpop.f32.mrf.mxu0
          %v482 = vadd.f32 0.0, %v481
          %483 = vmatmul.f32.gmra.mxu0 %v344
          %v484 = vpop.f32.mrf.mxu0
          %v485 = vadd.f32 0.0, %v484
          %486 = vdwg.mxu0
          %487 = vmatpush.msra.mxu0 %v408
          %488 = vmatpush.msra.mxu0 %v404
          %489 = vmatpush.msra.mxu0 %v400
          %490 = vmatpush.msra.mxu0 %v396
          %491 = vmatpush.msra.mxu0 %v392
          %492 = vmatpush.msra.mxu0 %v388
          %493 = vmatpush.msra.mxu0 %v384
          %494 = vmatpush.msra.mxu0 %v380
          %495 = vmatpush.msra.mxu0 %v376
          %496 = vmatpush.msra.mxu0 %v372
          %497 = vmatpush.msra.mxu0 %v368
          %498 = vmatpush.msra.mxu0 %v364
          %499 = vmatpush.msra.mxu0 %v360
          %500 = vmatpush.msra.mxu0 %v356
          %501 = vmatpush.msra.mxu0 %v352
          %502 = vmatpush.msra.mxu0 %v348
          %503 = vmatmul.f32.gmra.mxu0 %v342
          %v504 = vpop.f32.mrf.mxu0
          %v505 = vadd.f32 0.0, %v504
          %506 = vmatmul.f32.gmra.mxu0 %v343
          %v507 = vpop.f32.mrf.mxu0
          %v508 = vadd.f32 0.0, %v507
          %509 = vmatmul.f32.gmra.mxu0 %v344
          %v510 = vpop.f32.mrf.mxu0
          %v511 = vadd.f32 0.0, %v510
          %512 = vdwg.mxu0
          %v513 = vld [vmem:[#allocation9] sm:$0x3]
          %v515 = vperm.slane %v513, 0
          %v516 = vperm.slane %v513, 1
          %v519 = vadd.f32 %v427, %v515
          %v520 = vadd.f32 %v453, %v516
          %v521 = vadd.f32 %v430, %v515
          %v522 = vadd.f32 %v456, %v516
          %v523 = vadd.f32 %v433, %v515
          %v524 = vadd.f32 %v459, %v516
          %v525 = vmax.f32 %v519, 0.0
          %v526 = vmax.f32 %v520, 0.0
          %v527 = vmax.f32 %v521, 0.0
          %v528 = vmax.f32 %v522, 0.0
          %v529 = vmax.f32 %v523, 0.0
          %v530 = vmax.f32 %v524, 0.0
          %531 = vst [vmem:[#allocation2] sm:$0xff] %v525
          %532 = vst [vmem:[#allocation2 + $0x8] sm:$0xff] %v526
          %533 = vst [vmem:[#allocation2 + $0x10] sm:$0xff] %v527
          %534 = vst [vmem:[#allocation2 + $0x18] sm:$0xff] %v528
          %535 = vst [vmem:[#allocation2 + $0x20] sm:$0xff] %v529
          %536 = vst [vmem:[#allocation2 + $0x28] sm:$0xff] %v530
          %537 = vst [vmem:[#allocation3] sm:$0xff] %v479
          %538 = vst [vmem:[#allocation3 + $0x8] sm:$0xff] %v505
          %539 = vst [vmem:[#allocation3 + $0x10] sm:$0xff] %v482
          %540 = vst [vmem:[#allocation3 + $0x18] sm:$0xff] %v508
          %541 = vst [vmem:[#allocation3 + $0x20] sm:$0xff] %v485
          %542 = vst [vmem:[#allocation3 + $0x28] sm:$0xff] %v511
        $region60: #{tpu_custom_call.1} parent=39 // pred_fallthru
          _
        %s543 = smul.u32 %s29, 256
        %v544 = vld [vmem:[#allocation2] sm:$0xff]
        %v545 = vld [vmem:[#allocation2 + $0x8] sm:$0xff]
        %v546 = vld [vmem:[#allocation2 + $0x10] sm:$0xff]
        %v547 = vld [vmem:[#allocation2 + $0x18] sm:$0xff]
        %v548 = vld [vmem:[#allocation2 + $0x20] sm:$0xff]
        %v549 = vld [vmem:[#allocation2 + $0x28] sm:$0xff]
        %v550 = vld [vmem:[#allocation10] sm:$0xff]
        %v551 = vld [vmem:[#allocation10 + $0x8] sm:$0xff]
        %v552 = vld [vmem:[#allocation10 + $0x10] sm:$0xff]
        %v553 = vld [vmem:[#allocation10 + $0x18] sm:$0xff]
        %v554 = vld [vmem:[#allocation10 + $0x20] sm:$0xff]
        %v555 = vld [vmem:[#allocation10 + $0x28] sm:$0xff]
        %v556 = vld [vmem:[#allocation10 + $0x30] sm:$0xff]
        %v557 = vld [vmem:[#allocation10 + $0x38] sm:$0xff]
        %v558 = vld [vmem:[#allocation10 + $0x40] sm:$0xff]
        %v559 = vld [vmem:[#allocation10 + $0x48] sm:$0xff]
        %v560 = vld [vmem:[#allocation10 + $0x50] sm:$0xff]
        %v561 = vld [vmem:[#allocation10 + $0x58] sm:$0xff]
        %v562 = vld [vmem:[#allocation10 + $0x60] sm:$0xff]
        %v563 = vld [vmem:[#allocation10 + $0x68] sm:$0xff]
        %v564 = vld [vmem:[#allocation10 + $0x70] sm:$0xff]
        %v565 = vld [vmem:[#allocation10 + $0x78] sm:$0xff]
        %v566 = vld [vmem:[#allocation10 + $0x80] sm:$0xff]
        %v567 = vld [vmem:[#allocation10 + $0x88] sm:$0xff]
        %v568 = vld [vmem:[#allocation10 + $0x90] sm:$0xff]
        %v569 = vld [vmem:[#allocation10 + $0x98] sm:$0xff]
        %v570 = vld [vmem:[#allocation10 + $0xa0] sm:$0xff]
        %v571 = vld [vmem:[#allocation10 + $0xa8] sm:$0xff]
        %v572 = vld [vmem:[#allocation10 + $0xb0] sm:$0xff]
        %v573 = vld [vmem:[#allocation10 + $0xb8] sm:$0xff]
        %v574 = vld [vmem:[#allocation10 + $0xc0] sm:$0xff]
        %v575 = vld [vmem:[#allocation10 + $0xc8] sm:$0xff]
        %v576 = vld [vmem:[#allocation10 + $0xd0] sm:$0xff]
        %v577 = vld [vmem:[#allocation10 + $0xd8] sm:$0xff]
        %v578 = vld [vmem:[#allocation10 + $0xe0] sm:$0xff]
        %v579 = vld [vmem:[#allocation10 + $0xe8] sm:$0xff]
        %v580 = vld [vmem:[#allocation10 + $0xf0] sm:$0xff]
        %v581 = vld [vmem:[#allocation10 + $0xf8] sm:$0xff]
        %v582 = vld [vmem:[#allocation10 + $0x100] sm:$0xff]
        %v583 = vld [vmem:[#allocation10 + $0x108] sm:$0xff]
        %v584 = vld [vmem:[#allocation10 + $0x110] sm:$0xff]
        %v585 = vld [vmem:[#allocation10 + $0x118] sm:$0xff]
        %v586 = vld [vmem:[#allocation10 + $0x120] sm:$0xff]
        %v587 = vld [vmem:[#allocation10 + $0x128] sm:$0xff]
        %v588 = vld [vmem:[#allocation10 + $0x130] sm:$0xff]
        %v589 = vld [vmem:[#allocation10 + $0x138] sm:$0xff]
        %v590 = vld [vmem:[#allocation10 + $0x140] sm:$0xff]
        %v591 = vld [vmem:[#allocation10 + $0x148] sm:$0xff]
        %v592 = vld [vmem:[#allocation10 + $0x150] sm:$0xff]
        %v593 = vld [vmem:[#allocation10 + $0x158] sm:$0xff]
        %v594 = vld [vmem:[#allocation10 + $0x160] sm:$0xff]
        %v595 = vld [vmem:[#allocation10 + $0x168] sm:$0xff]
        %v596 = vld [vmem:[#allocation10 + $0x170] sm:$0xff]
        %v597 = vld [vmem:[#allocation10 + $0x178] sm:$0xff]
        %v598 = vld [vmem:[#allocation10 + $0x180] sm:$0xff]
        %v599 = vld [vmem:[#allocation10 + $0x188] sm:$0xff]
        %v600 = vld [vmem:[#allocation10 + $0x190] sm:$0xff]
        %v601 = vld [vmem:[#allocation10 + $0x198] sm:$0xff]
        %v602 = vld [vmem:[#allocation10 + $0x1a0] sm:$0xff]
        %v603 = vld [vmem:[#allocation10 + $0x1a8] sm:$0xff]
        %v604 = vld [vmem:[#allocation10 + $0x1b0] sm:$0xff]
        %v605 = vld [vmem:[#allocation10 + $0x1b8] sm:$0xff]
        %v606 = vld [vmem:[#allocation10 + $0x1c0] sm:$0xff]
        %v607 = vld [vmem:[#allocation10 + $0x1c8] sm:$0xff]
        %v608 = vld [vmem:[#allocation10 + $0x1d0] sm:$0xff]
        %v609 = vld [vmem:[#allocation10 + $0x1d8] sm:$0xff]
        %v610 = vld [vmem:[#allocation10 + $0x1e0] sm:$0xff]
        %v611 = vld [vmem:[#allocation10 + $0x1e8] sm:$0xff]
        %v612 = vld [vmem:[#allocation10 + $0x1f0] sm:$0xff]
        %v613 = vld [vmem:[#allocation10 + $0x1f8] sm:$0xff]
        %s614 = sshra.s32 %s543, 7
        %s615 = sand.u32 %s543, 127
        %s616 = smul.addr %s614, 8
        %s617 = scalar_lea.vmem [#allocation3], %s616
        %v618 = vld [vmem:[%s617] sm:$0xff]
        %v619 = vld [vmem:[%s617 + $0x8] sm:$0xff]
        %v620 = vld [vmem:[%s617 + $0x10] sm:$0xff]
        %v621 = vld [vmem:[%s617 + $0x18] sm:$0xff]
        %v622 = vld [vmem:[%s617 + $0x20] sm:$0xff]
        %v623 = vld [vmem:[%s617 + $0x28] sm:$0xff]
        %624 = vmatpush.msra.mxu0 %v580
        %625 = vmatpush.msra.mxu0 %v578
        %626 = vmatpush.msra.mxu0 %v576
        %627 = vmatpush.msra.mxu0 %v574
        %628 = vmatpush.msra.mxu0 %v572
        %629 = vmatpush.msra.mxu0 %v570
        %630 = vmatpush.msra.mxu0 %v568
        %631 = vmatpush.msra.mxu0 %v566
        %632 = vmatpush.msra.mxu0 %v564
        %633 = vmatpush.msra.mxu0 %v562
        %634 = vmatpush.msra.mxu0 %v560
        %635 = vmatpush.msra.mxu0 %v558
        %636 = vmatpush.msra.mxu0 %v556
        %637 = vmatpush.msra.mxu0 %v554
        %638 = vmatpush.msra.mxu0 %v552
        %639 = vmatpush.msra.mxu0 %v550
        %640 = vmatmul.f32.gmra.mxu0 %v544
        %v641 = vpop.f32.mrf.mxu0
        %v642 = vadd.f32 %v618, %v641
        %643 = vmatmul.f32.gmra.mxu0 %v546
        %v644 = vpop.f32.mrf.mxu0
        %v645 = vadd.f32 %v620, %v644
        %646 = vmatmul.f32.gmra.mxu0 %v548
        %v647 = vpop.f32.mrf.mxu0
        %v648 = vadd.f32 %v622, %v647
        %649 = vdwg.mxu0
        %650 = vmatpush.msra.mxu0 %v612
        %651 = vmatpush.msra.mxu0 %v610
        %652 = vmatpush.msra.mxu0 %v608
        %653 = vmatpush.msra.mxu0 %v606
        %654 = vmatpush.msra.mxu0 %v604
        %655 = vmatpush.msra.mxu0 %v602
        %656 = vmatpush.msra.mxu0 %v600
        %657 = vmatpush.msra.mxu0 %v598
        %658 = vmatpush.msra.mxu0 %v596
        %659 = vmatpush.msra.mxu0 %v594
        %660 = vmatpush.msra.mxu0 %v592
        %661 = vmatpush.msra.mxu0 %v590
        %662 = vmatpush.msra.mxu0 %v588
        %663 = vmatpush.msra.mxu0 %v586
        %664 = vmatpush.msra.mxu0 %v584
        %665 = vmatpush.msra.mxu0 %v582
        %666 = vmatmul.f32.gmra.mxu0 %v545
        %v667 = vpop.f32.mrf.mxu0
        %v668 = vadd.f32 %v642, %v667
        %669 = vmatmul.f32.gmra.mxu0 %v547
        %v670 = vpop.f32.mrf.mxu0
        %v671 = vadd.f32 %v645, %v670
        %672 = vmatmul.f32.gmra.mxu0 %v549
        %v673 = vpop.f32.mrf.mxu0
        %v674 = vadd.f32 %v648, %v673
        %675 = vdwg.mxu0
        %676 = vmatpush.msra.mxu0 %v581
        %677 = vmatpush.msra.mxu0 %v579
        %678 = vmatpush.msra.mxu0 %v577
        %679 = vmatpush.msra.mxu0 %v575
        %680 = vmatpush.msra.mxu0 %v573
        %681 = vmatpush.msra.mxu0 %v571
        %682 = vmatpush.msra.mxu0 %v569
        %683 = vmatpush.msra.mxu0 %v567
        %684 = vmatpush.msra.mxu0 %v565
        %685 = vmatpush.msra.mxu0 %v563
        %686 = vmatpush.msra.mxu0 %v561
        %687 = vmatpush.msra.mxu0 %v559
        %688 = vmatpush.msra.mxu0 %v557
        %689 = vmatpush.msra.mxu0 %v555
        %690 = vmatpush.msra.mxu0 %v553
        %691 = vmatpush.msra.mxu0 %v551
        %692 = vmatmul.f32.gmra.mxu0 %v544
        %v693 = vpop.f32.mrf.mxu0
        %v694 = vadd.f32 %v619, %v693
        %695 = vmatmul.f32.gmra.mxu0 %v546
        %v696 = vpop.f32.mrf.mxu0
        %v697 = vadd.f32 %v621, %v696
        %698 = vmatmul.f32.gmra.mxu0 %v548
        %v699 = vpop.f32.mrf.mxu0
        %v700 = vadd.f32 %v623, %v699
        %701 = vdwg.mxu0
        %702 = vmatpush.msra.mxu0 %v613
        %703 = vmatpush.msra.mxu0 %v611
        %704 = vmatpush.msra.mxu0 %v609
        %705 = vmatpush.msra.mxu0 %v607
        %706 = vmatpush.msra.mxu0 %v605
        %707 = vmatpush.msra.mxu0 %v603
        %708 = vmatpush.msra.mxu0 %v601
        %709 = vmatpush.msra.mxu0 %v599
        %710 = vmatpush.msra.mxu0 %v597
        %711 = vmatpush.msra.mxu0 %v595
        %712 = vmatpush.msra.mxu0 %v593
        %713 = vmatpush.msra.mxu0 %v591
        %714 = vmatpush.msra.mxu0 %v589
        %715 = vmatpush.msra.mxu0 %v587
        %716 = vmatpush.msra.mxu0 %v585
        %717 = vmatpush.msra.mxu0 %v583
        %718 = vmatmul.f32.gmra.mxu0 %v545
        %v719 = vpop.f32.mrf.mxu0
        %v720 = vadd.f32 %v694, %v719
        %721 = vmatmul.f32.gmra.mxu0 %v547
        %v722 = vpop.f32.mrf.mxu0
        %v723 = vadd.f32 %v697, %v722
        %724 = vmatmul.f32.gmra.mxu0 %v549
        %v725 = vpop.f32.mrf.mxu0
        %v726 = vadd.f32 %v700, %v725
        %727 = vdwg.mxu0
        %v728 = vld [vmem:[%s334] sm:$0x3]
        %v730 = vperm.slane %v728, 0
        %v731 = vperm.slane %v728, 1
        %v734 = vadd.f32 %v668, %v730
        %v735 = vadd.f32 %v720, %v731
        %v736 = vadd.f32 %v671, %v730
        %v737 = vadd.f32 %v723, %v731
        %v738 = vadd.f32 %v674, %v730
        %v739 = vadd.f32 %v726, %v731
        %v740 = vmax.f32 %v734, 0.0
        %v741 = vmax.f32 %v735, 0.0
        %v742 = vmax.f32 %v736, 0.0
        %v743 = vmax.f32 %v737, 0.0
        %v744 = vmax.f32 %v738, 0.0
        %v745 = vmax.f32 %v739, 0.0
        %746 = vst [vmem:[%s328] sm:$0xff] %v740
        %747 = vst [vmem:[%s328 + $0x8] sm:$0xff] %v741
        %748 = vst [vmem:[%s328 + $0x10] sm:$0xff] %v742
        %749 = vst [vmem:[%s328 + $0x18] sm:$0xff] %v743
        %750 = vst [vmem:[%s328 + $0x20] sm:$0xff] %v744
        %751 = vst [vmem:[%s328 + $0x28] sm:$0xff] %v745
        %s752 = sand.u32 %s166, 1
        %s753 = scalar_lea.sflag [#allocation6], %s752
        %s754 = sand.u32 %s166, 1
        %s755 = smul.addr %s754, 48
        %s756 = scalar_lea.vmem [#allocation12], %s755
        // Predicated region
        $region61: #{tpu_custom_call.1} parent=39 // pred_check
          %p757 = pneg %p176
        $region62: #{tpu_custom_call.1} parent=39 // pred_check_branch
          %759 = sbr.rel (%p757) target = $region64
        $region63: #{tpu_custom_call.1} parent=39 // pred_region
          %s760 = smul.u32 3, %s28
          %s761 = smul.u32 2, %s29
          %763 = vsyncadd %s753, 0
          %s764 = smul.addr %s760, 2
          %s765 = sadd.s32 %s761, %s764
          %s766 = smul.addr %s765, 8
          %s767 = scalar_lea.hbm %s5, %s766
          %s768 = sshll.u32 %s756, 4
          %s769 = int_to_ptr.vmem [resolvable:$true] %s768
          %s770 = sshll.u32 %s767, 4
          %s771 = int_to_ptr.hbm [resolvable:$true] %s770
          %776 = dma.vmem_to_hbm [thread:$0]  %s769, 768, %s771, %s753, 256, 256, 16
        $region64: #{tpu_custom_call.1} parent=39 // pred_fallthru
          _
      $region40: #{tpu_custom_call.1} parent=5 // pred_fallthru
        _
      %p777 = scmp.le.s32.totalorder 2, %s19
      // Predicated region
      $region65: #{tpu_custom_call.1} parent=5 // pred_check
        %p778 = pneg %p777
      $region66: #{tpu_custom_call.1} parent=5 // pred_check_branch
        %780 = sbr.rel (%p778) target = $region68
      $region67: #{tpu_custom_call.1} parent=5 // pred_region
        %s781 = ssub.s32 %s19, 2
        // Predicated region
        $region69: #{tpu_custom_call.1} parent=67 // pred_check
          %p782 = pneg %p182
        $region70: #{tpu_custom_call.1} parent=67 // pred_check_branch
          %784 = sbr.rel (%p782) target = $region72
        $region71: #{tpu_custom_call.1} parent=67 // pred_region
          %s785 = sand.u32 %s167, 1
          %s786 = scalar_lea.sflag [#allocation6], %s785
          %s787 = sand.u32 %s167, 1
          %s788 = smul.addr %s787, 48
          %s789 = scalar_lea.vmem [#allocation12], %s788
          %791 = dma.done %s786, 768
        $region72: #{tpu_custom_call.1} parent=67 // pred_fallthru
          _
      $region68: #{tpu_custom_call.1} parent=5 // pred_fallthru
        _
    $region6: #{tpu_custom_call.1} parent=1 // loop_footer
      %s23 = sadd.s32 1, %s19
    $region7: #{tpu_custom_call.1} parent=1 // loop_footer_branch
      %18 = sbr.rel target = $region3
    $region8: #{tpu_custom_call.1} parent=1 // loop_exit
      _
    %792 = vsyncpa [#allocation5], 1
    %s793 = scalar_lea.sflag [#allocation5], 1
    %794 = vsyncpa %s793, 1
    %795 = vsyncpa [#allocation8], 1
    %796 = vsyncpa [#allocation11], 1
    %797 = vsyncpa [#allocation6], 1
    %s798 = scalar_lea.sflag [#allocation6], 1
    %799 = vsyncpa %s798, 1

// kernel: tpu_custom_call.1
$region0: #{tpu_custom_call.1}
  #allocation0 [shape = 'u32[]', space=smem, size = 0x4, offset = 0x4, fixed_abs, tag = 'smem constant byte address 0x4 - core index']
  #allocation1 [shape = 'u32[72,128]{1,0:T(1,128)}', space=vmem, size = 0x9000, scoped, tag = 'internal scratch']
  #allocation2 [shape = 'f32[24,256]{1,0:T(8,128)}', space=vmem, size = 0x6000, scoped, tag = 'scratch operand']
  #allocation3 [shape = 'f32[24,256]{1,0:T(8,128)}', space=vmem, size = 0x6000, scoped, tag = 'scratch operand']
  %s0 = inlined_call_operand.hbm [shape: f32[48,128], index: 0, kind: input, shape index: {}]
  %s1 = inlined_call_operand.hbm [shape: f32[128,512], index: 1, kind: input, shape index: {}]
  %s2 = inlined_call_operand.hbm [shape: f32[1,256], index: 2, kind: input, shape index: {}]
  %s3 = inlined_call_operand.hbm [shape: f32[256,256], index: 3, kind: input, shape index: {}]
  %s4 = inlined_call_operand.vmem [shape: f32[1,256], index: 4, kind: input, shape index: {}]
  %s5 = inlined_call_operand.hbm [shape: f32[48,256], index: 5, kind: output, shape index: {}]
  %s6 = sld [smem:[#allocation0]]
  $region73: #{tpu_custom_call.1} parent=0
    _
  %s8 = ssub.s32 1, %s6
  %s9 = scalar_select 0, %s8, %s6
  $region1: #{tpu_custom_call.1} parent=0
    #allocation4 [shape = 'u8[24576]{0}', space=vmem, size = 0x6000, scoped, tag = 'input window, operand 0']
    #allocation5 [shape = 's32[2]{0}', space=sflag, size = 0x8, scoped, tag = 'scoped memory for tpu_custom_call.1']
    #allocation6 [shape = 's32[2]{0}', space=sflag, size = 0x8, scoped, tag = 'scoped memory for tpu_custom_call.1']
    #allocation7 [shape = 'u8[262144]{0}', space=vmem, size = 0x40000, scoped, tag = 'input window, operand 1, single buffered']
    #allocation8 [shape = 's32[1]{0}', space=sflag, size = 0x4, scoped, tag = 'scoped memory for tpu_custom_call.1']
    #allocation9 [shape = 'u8[1024]{0}', space=vmem, size = 0x400, scoped, tag = 'input window, operand 2, single buffered']
    #allocation10 [shape = 'u8[262144]{0}', space=vmem, size = 0x40000, scoped, tag = 'input window, operand 3, single buffered']
    #allocation11 [shape = 's32[1]{0}', space=sflag, size = 0x4, scoped, tag = 'scoped memory for tpu_custom_call.1']
    #allocation12 [shape = 'u8[49152]{0}', space=vmem, size = 0xc000, scoped, tag = 'output window, operand 0']
    %10 = vsyncpa [#allocation5], 0
    %s11 = scalar_lea.sflag [#allocation5], 1
    %12 = vsyncpa %s11, 0
    %13 = vsyncpa [#allocation8], 0
    %14 = vsyncpa [#allocation11], 0
    %15 = vsyncpa [#allocation6], 0
    %s16 = scalar_lea.sflag [#allocation6], 1
    %17 = vsyncpa %s16, 0
    loop: start=0, step=1, limit=4
    $region2: #{tpu_custom_call.1} parent=1 // loop_pre_header
      _
    $region3: #{tpu_custom_call.1} parent=1 // loop_header
      %s19 = sphi 0, %s23
      %p20 = scmp.ge.s32.totalorder %s19, 4
      %s26 = sphi 0, %s38
      %s27 = sphi 0, %s34
      %s28 = sphi 0, %s26
      %s29 = sphi 0, %s27
      %s30 = sphi 0, %s28
      %s31 = sphi 0, %s29
      %s41 = sphi 0, %s43
      %s44 = sphi 0, %s41
      %s45 = sphi 0, %s44
      %s61 = sphi 0, %s45
      %s65 = sphi 0, %s65
      %s67 = sphi 0, %s65
      %s68 = sphi 0, %s67
      %s82 = sphi 0, %s68
      %s86 = sphi 0, %s86
      %s88 = sphi 0, %s86
      %s89 = sphi 0, %s88
      %s103 = sphi 0, %s89
      %s109 = sphi 0, %s111
      %s112 = sphi 0, %s109
      %s113 = sphi 0, %s112
      %s129 = sphi 0, %s113
      %s135 = sphi 0, %s137
      %s138 = sphi 0, %s135
      %s139 = sphi 0, %s138
      %s155 = sphi 0, %s139
      %s163 = sphi 0, %s165
      %s166 = sphi 0, %s163
      %s167 = sphi 0, %s166
      %s183 = sphi 0, %s167
    $region4: #{tpu_custom_call.1} parent=1 // loop_header_branch
      %22 = sbr.rel (%p20) target = $region8
    $region5: #{tpu_custom_call.1} parent=1 // loop_body
      %s24 = ssub.s32 %s19, 1
      %s25 = ssub.s32 %s19, 2
      %s32 = sadd.s32 1, %s27
      %p33 = scmp.ge.s32.totalorder %s32, 1
      %s34 = scalar_select %p33, 0, %s32
      %s35 = sadd.s32 1, %s26
      %s36 = scalar_select %p33, %s35, %s26
      %p37 = scmp.ge.s32.totalorder %s36, 2
      %s38 = scalar_select %p37, 0, %s36
      %s39 = ssub.s32 %s26, %s38
      %p40 = scmp.eq.s32.totalorder %s39, 0
      %s42 = sadd.s32 %s41, 1
      %s43 = scalar_select %p40, %s41, %s42
      %p46 = pneg %p40
      %p47 = scmp.eq.s32.totalorder %s19, 1
      %p48 = por %p46, %p47
      %p49 = scmp.ne.s32.totalorder %s41, %s44
      %p50 = scmp.eq.s32.totalorder %s19, 0
      %p51 = por %p49, %p50
      %p52 = scmp.ne.s32.totalorder %s41, %s44
      %p53 = scmp.eq.s32.totalorder %s24, 1
      %p54 = por %p52, %p53
      %p55 = scmp.ne.s32.totalorder %s44, %s45
      %p56 = scmp.eq.s32.totalorder %s24, 0
      %p57 = por %p55, %p56
      %p58 = scmp.ne.s32.totalorder %s44, %s45
      %p59 = scmp.eq.s32.totalorder %s25, 1
      %p60 = por %p58, %p59
      %p62 = scmp.ne.s32.totalorder %s45, %s61
      %p63 = scmp.eq.s32.totalorder %s25, 0
      %p64 = por %p62, %p63
      %s66 = sadd.s32 %s65, 1
      %p69 = scmp.eq.s32.totalorder %s19, 1
      %p70 = scmp.ne.s32.totalorder %s65, %s67
      %p71 = scmp.eq.s32.totalorder %s19, 0
      %p72 = por %p70, %p71
      %p73 = scmp.ne.s32.totalorder %s65, %s67
      %p74 = scmp.eq.s32.totalorder %s24, 1
      %p75 = por %p73, %p74
      %p76 = scmp.ne.s32.totalorder %s67, %s68
      %p77 = scmp.eq.s32.totalorder %s24, 0
      %p78 = por %p76, %p77
      %p79 = scmp.ne.s32.totalorder %s67, %s68
      %p80 = scmp.eq.s32.totalorder %s25, 1
      %p81 = por %p79, %p80
      %p83 = scmp.ne.s32.totalorder %s68, %s82
      %p84 = scmp.eq.s32.totalorder %s25, 0
      %p85 = por %p83, %p84
      %s87 = sadd.s32 %s86, 1
      %p90 = scmp.eq.s32.totalorder %s19, 1
      %p91 = scmp.ne.s32.totalorder %s86, %s88
      %p92 = scmp.eq.s32.totalorder %s19, 0
      %p93 = por %p91, %p92
      %p94 = scmp.ne.s32.totalorder %s86, %s88
      %p95 = scmp.eq.s32.totalorder %s24, 1
      %p96 = por %p94, %p95
      %p97 = scmp.ne.s32.totalorder %s88, %s89
      %p98 = scmp.eq.s32.totalorder %s24, 0
      %p99 = por %p97, %p98
      %p100 = scmp.ne.s32.totalorder %s88, %s89
      %p101 = scmp.eq.s32.totalorder %s25, 1
      %p102 = por %p100, %p101
      %p104 = scmp.ne.s32.totalorder %s89, %s103
      %p105 = scmp.eq.s32.totalorder %s25, 0
      %p106 = por %p104, %p105
      %s107 = ssub.s32 %s27, %s34
      %p108 = scmp.eq.s32.totalorder %s107, 0
      %s110 = sadd.s32 %s109, 1
      %s111 = scalar_select %p108, %s109, %s110
      %p114 = pneg %p108
      %p115 = scmp.eq.s32.totalorder %s19, 1
      %p116 = por %p114, %p115
      %p117 = scmp.ne.s32.totalorder %s109, %s112
      %p118 = scmp.eq.s32.totalorder %s19, 0
      %p119 = por %p117, %p118
      %p120 = scmp.ne.s32.totalorder %s109, %s112
      %p121 = scmp.eq.s32.totalorder %s24, 1
      %p122 = por %p120, %p121
      %p123 = scmp.ne.s32.totalorder %s112, %s113
      %p124 = scmp.eq.s32.totalorder %s24, 0
      %p125 = por %p123, %p124
      %p126 = scmp.ne.s32.totalorder %s112, %s113
      %p127 = scmp.eq.s32.totalorder %s25, 1
      %p128 = por %p126, %p127
      %p130 = scmp.ne.s32.totalorder %s113, %s129
      %p131 = scmp.eq.s32.totalorder %s25, 0
      %p132 = por %p130, %p131
      %s133 = ssub.s32 %s27, %s34
      %p134 = scmp.eq.s32.totalorder %s133, 0
      %s136 = sadd.s32 %s135, 1
      %s137 = scalar_select %p134, %s135, %s136
      %p140 = pneg %p134
      %p141 = scmp.eq.s32.totalorder %s19, 1
      %p142 = por %p140, %p141
      %p143 = scmp.ne.s32.totalorder %s135, %s138
      %p144 = scmp.eq.s32.totalorder %s19, 0
      %p145 = por %p143, %p144
      %p146 = scmp.ne.s32.totalorder %s135, %s138
      %p147 = scmp.eq.s32.totalorder %s24, 1
      %p148 = por %p146, %p147
      %p149 = scmp.ne.s32.totalorder %s138, %s139
      %p150 = scmp.eq.s32.totalorder %s24, 0
      %p151 = por %p149, %p150
      %p152 = scmp.ne.s32.totalorder %s138, %s139
      %p153 = scmp.eq.s32.totalorder %s25, 1
      %p154 = por %p152, %p153
      %p156 = scmp.ne.s32.totalorder %s139, %s155
      %p157 = scmp.eq.s32.totalorder %s25, 0
      %p158 = por %p156, %p157
      %s159 = ssub.s32 %s26, %s38
      %s160 = ssub.s32 %s27, %s34
      %s161 = sor.u32 %s159, %s160
      %p162 = scmp.eq.s32.totalorder %s161, 0
      %s164 = sadd.s32 %s163, 1
      %s165 = scalar_select %p162, %s163, %s164
      %p168 = pneg %p162
      %p169 = scmp.eq.s32.totalorder %s19, 1
      %p170 = por %p168, %p169
      %p171 = scmp.ne.s32.totalorder %s163, %s166
      %p172 = scmp.eq.s32.totalorder %s19, 0
      %p173 = por %p171, %p172
      %p174 = scmp.ne.s32.totalorder %s163, %s166
      %p175 = scmp.eq.s32.totalorder %s24, 1
      %p176 = por %p174, %p175
      %p177 = scmp.ne.s32.totalorder %s166, %s167
      %p178 = scmp.eq.s32.totalorder %s24, 0
      %p179 = por %p177, %p178
      %p180 = scmp.ne.s32.totalorder %s166, %s167
      %p181 = scmp.eq.s32.totalorder %s25, 1
      %p182 = por %p180, %p181
      %p184 = scmp.ne.s32.totalorder %s167, %s183
      %p185 = scmp.eq.s32.totalorder %s25, 0
      %p186 = por %p184, %p185
      %p187 = scmp.le.s32.totalorder 1, %s19
      %p188 = scmp.lt.s32.totalorder %s19, 3
      %p189 = pnand %p187, %p188
      %p190 = pneg %p189
      // Predicated region
      $region9: #{tpu_custom_call.1} parent=5 // pred_check
        _
      $region10: #{tpu_custom_call.1} parent=5 // pred_check_branch
        %192 = sbr.rel (%p189) target = $region12
      $region11: #{tpu_custom_call.1} parent=5 // pred_region
        %s193 = ssub.s32 %s19, 1
        // Predicated region
        $region13: #{tpu_custom_call.1} parent=11 // pred_check
          %p194 = pneg %p78
        $region14: #{tpu_custom_call.1} parent=11 // pred_check_branch
          %196 = sbr.rel (%p194) target = $region16
        $region15: #{tpu_custom_call.1} parent=11 // pred_region
          %198 = vsyncadd [#allocation8], 0
          %s199 = sshll.u32 %s1, 4
          %s200 = int_to_ptr.hbm [resolvable:$true] %s199
          %s201 = sshll.u32 [#allocation7], 4
          %s202 = int_to_ptr.vmem [resolvable:$true] %s201
          %207 = dma.hbm_to_vmem [thread:$0]  %s200, 8192, %s202, [#allocation8], 512, 512, 32
        $region16: #{tpu_custom_call.1} parent=11 // pred_fallthru
          _
        // Predicated region
        $region17: #{tpu_custom_call.1} parent=11 // pred_check
          %p208 = pneg %p99
        $region18: #{tpu_custom_call.1} parent=11 // pred_check_branch
          %210 = sbr.rel (%p208) target = $region20
        $region19: #{tpu_custom_call.1} parent=11 // pred_region
          %212 = vsyncadd [#allocation8], 0
          %s214 = sshll.u32 %s2, 4
          %s215 = int_to_ptr.hbm [resolvable:$true] %s214
          %s216 = sshll.u32 [#allocation9], 4
          %s217 = int_to_ptr.vmem [resolvable:$true] %s216
          %219 = dma.hbm_to_vmem [thread:$0]  %s215, 32, %s217, [#allocation8]
        $region20: #{tpu_custom_call.1} parent=11 // pred_fallthru
          _
        // Predicated region
        $region21: #{tpu_custom_call.1} parent=11 // pred_check
          %p220 = pneg %p125
        $region22: #{tpu_custom_call.1} parent=11 // pred_check_branch
          %222 = sbr.rel (%p220) target = $region24
        $region23: #{tpu_custom_call.1} parent=11 // pred_region
          %s223 = smul.u32 2, %s29
          %225 = vsyncadd [#allocation11], 0
          %s226 = smul.addr %s223, 8
          %s227 = scalar_lea.hbm %s3, %s226
          %s228 = sshll.u32 %s227, 4
          %s229 = int_to_ptr.hbm [resolvable:$true] %s228
          %s230 = sshll.u32 [#allocation10], 4
          %s231 = int_to_ptr.vmem [resolvable:$true] %s230
          %236 = dma.hbm_to_vmem [thread:$0]  %s229, 8192, %s231, [#allocation11], 256, 256, 16
        $region24: #{tpu_custom_call.1} parent=11 // pred_fallthru
          _
        // Predicated region
        $region25: #{tpu_custom_call.1} parent=11 // pred_check
          %p237 = pneg %p151
        $region26: #{tpu_custom_call.1} parent=11 // pred_check_branch
          %239 = sbr.rel (%p237) target = $region28
        $region27: #{tpu_custom_call.1} parent=11 // pred_region
          %s240 = smul.u32 2, %s29
          %p241 = scmp.lt.s32.totalorder %s240, 1
          %s242 = scalar_select %p241, %s240, 1
          %s243 = scalar_lea.vmem %s4, %s242
          %s244 = smul.u32 2, %s29
        $region28: #{tpu_custom_call.1} parent=11 // pred_fallthru
          _
      $region12: #{tpu_custom_call.1} parent=5 // pred_fallthru
        _
      %p245 = scmp.lt.s32.totalorder %s19, 2
      // Predicated region
      $region29: #{tpu_custom_call.1} parent=5 // pred_check
        %p246 = pneg %p245
      $region30: #{tpu_custom_call.1} parent=5 // pred_check_branch
        %248 = sbr.rel (%p246) target = $region32
      $region31: #{tpu_custom_call.1} parent=5 // pred_region
        // Predicated region
        $region33: #{tpu_custom_call.1} parent=31 // pred_check
          %p249 = pneg %p51
        $region34: #{tpu_custom_call.1} parent=31 // pred_check_branch
          %251 = sbr.rel (%p249) target = $region36
        $region35: #{tpu_custom_call.1} parent=31 // pred_region
          %s252 = sand.u32 %s41, 1
          %s253 = scalar_lea.sflag [#allocation5], %s252
          %s254 = sand.u32 %s41, 1
          %s255 = smul.addr %s254, 24
          %s256 = scalar_lea.vmem [#allocation4], %s255
          %s257 = smul.u32 3, %s26
          %259 = vsyncadd %s253, 0
          %s260 = smul.addr %s257, 8
          %s261 = scalar_lea.hbm %s0, %s260
          %s262 = sshll.u32 %s261, 4
          %s263 = int_to_ptr.hbm [resolvable:$true] %s262
          %s264 = sshll.u32 %s256, 4
          %s265 = int_to_ptr.vmem [resolvable:$true] %s264
          %270 = dma.hbm_to_vmem [thread:$0]  %s263, 384, %s265, %s253, 128, 128, 8
        $region36: #{tpu_custom_call.1} parent=31 // pred_fallthru
          _
      $region32: #{tpu_custom_call.1} parent=5 // pred_fallthru
        _
      %p271 = scmp.le.s32.totalorder 1, %s19
      %p272 = scmp.lt.s32.totalorder %s19, 3
      %p273 = pnand %p271, %p272
      %p274 = pneg %p273
      // Predicated region
      $region37: #{tpu_custom_call.1} parent=5 // pred_check
        _
      $region38: #{tpu_custom_call.1} parent=5 // pred_check_branch
        %276 = sbr.rel (%p273) target = $region40
      $region39: #{tpu_custom_call.1} parent=5 // pred_region
        %s277 = ssub.s32 %s19, 1
        %s278 = sand.u32 %s44, 1
        %s279 = scalar_lea.sflag [#allocation5], %s278
        %s280 = sand.u32 %s44, 1
        %s281 = smul.addr %s280, 24
        %s282 = scalar_lea.vmem [#allocation4], %s281
        // Predicated region
        $region41: #{tpu_custom_call.1} parent=39 // pred_check
          %p283 = pneg %p57
        $region42: #{tpu_custom_call.1} parent=39 // pred_check_branch
          %285 = sbr.rel (%p283) target = $region44
        $region43: #{tpu_custom_call.1} parent=39 // pred_region
          %287 = dma.done %s279, 384
        $region44: #{tpu_custom_call.1} parent=39 // pred_fallthru
          _
        // Predicated region
        $region45: #{tpu_custom_call.1} parent=39 // pred_check
          %p288 = pneg %p78
        $region46: #{tpu_custom_call.1} parent=39 // pred_check_branch
          %290 = sbr.rel (%p288) target = $region48
        $region47: #{tpu_custom_call.1} parent=39 // pred_region
          %292 = dma.done [#allocation8], 8192
        $region48: #{tpu_custom_call.1} parent=39 // pred_fallthru
          _
        // Predicated region
        $region49: #{tpu_custom_call.1} parent=39 // pred_check
          %p293 = pneg %p99
        $region50: #{tpu_custom_call.1} parent=39 // pred_check_branch
          %295 = sbr.rel (%p293) target = $region52
        $region51: #{tpu_custom_call.1} parent=39 // pred_region
          %297 = dma.done [#allocation8], 32
        $region52: #{tpu_custom_call.1} parent=39 // pred_fallthru
          _
        // Predicated region
        $region53: #{tpu_custom_call.1} parent=39 // pred_check
          %p298 = pneg %p125
        $region54: #{tpu_custom_call.1} parent=39 // pred_check_branch
          %300 = sbr.rel (%p298) target = $region56
        $region55: #{tpu_custom_call.1} parent=39 // pred_region
          %302 = dma.done [#allocation11], 8192
        $region56: #{tpu_custom_call.1} parent=39 // pred_fallthru
          _
        %s303 = sand.u32 %s44, 1
        %s304 = scalar_lea.sflag [#allocation5], %s303
        %s305 = sand.u32 %s44, 1
        %s306 = smul.addr %s305, 24
        %s307 = scalar_lea.vmem [#allocation4], %s306
        %p308 = pneg %p57
        %p309 = pneg %p54
        %p310 = pneg %p78
        %p311 = pneg %p75
        %p312 = pneg %p99
        %p313 = pneg %p96
        %p314 = pneg %p125
        %p315 = pneg %p122
        %s316 = smul.u32 2, %s29
        %p317 = scmp.lt.s32.totalorder %s316, 1
        %s318 = scalar_select %p317, %s316, 1
        %s319 = scalar_lea.vmem %s4, %s318
        %p320 = pneg %p151
        %p321 = pneg %p148
        %p322 = pneg %p179
        %p323 = pneg %p176
        %s324 = sand.u32 %s166, 1
        %s325 = scalar_lea.sflag [#allocation6], %s324
        %s326 = sand.u32 %s166, 1
        %s327 = smul.addr %s326, 48
        %s328 = scalar_lea.vmem [#allocation12], %s327
        %s329 = smul.u32 3, %s28
        %s330 = smul.u32 2, %s29
        %s331 = smul.u32 2, %s29
        %p332 = scmp.lt.s32.totalorder %s331, 1
        %s333 = scalar_select %p332, %s331, 1
        %s334 = scalar_lea.vmem %s4, %s333
        %s335 = smul.u32 2, %s29
        %s336 = smul.u32 3, %s28
        %s337 = smul.u32 2, %s29
        %p338 = scmp.eq.s32.totalorder %s29, 0
        // Predicated region
        $region57: #{tpu_custom_call.1} parent=39 // pred_check
          %p339 = pneg %p338
        $region58: #{tpu_custom_call.1} parent=39 // pred_check_branch
          %341 = sbr.rel (%p339) target = $region60
        $region59: #{tpu_custom_call.1} parent=39 // pred_region
          %v342 = vld [vmem:[%s282] sm:$0xff]
          %v343 = vld [vmem:[%s282 + $0x8] sm:$0xff]
          %v344 = vld [vmem:[%s282 + $0x10] sm:$0xff]
          %v345 = vld [vmem:[#allocation7] sm:$0xff]
          %v346 = vld [vmem:[#allocation7 + $0x8] sm:$0xff]
          %v347 = vld [vmem:[#allocation7 + $0x10] sm:$0xff]
          %v348 = vld [vmem:[#allocation7 + $0x18] sm:$0xff]
          %v349 = vld [vmem:[#allocation7 + $0x20] sm:$0xff]
          %v350 = vld [vmem:[#allocation7 + $0x28] sm:$0xff]
          %v351 = vld [vmem:[#allocation7 + $0x30] sm:$0xff]
          %v352 = vld [vmem:[#allocation7 + $0x38] sm:$0xff]
          %v353 = vld [vmem:[#allocation7 + $0x40] sm:$0xff]
          %v354 = vld [vmem:[#allocation7 + $0x48] sm:$0xff]
          %v355 = vld [vmem:[#allocation7 + $0x50] sm:$0xff]
          %v356 = vld [vmem:[#allocation7 + $0x58] sm:$0xff]
          %v357 = vld [vmem:[#allocation7 + $0x60] sm:$0xff]
          %v358 = vld [vmem:[#allocation7 + $0x68] sm:$0xff]
          %v359 = vld [vmem:[#allocation7 + $0x70] sm:$0xff]
          %v360 = vld [vmem:[#allocation7 + $0x78] sm:$0xff]
          %v361 = vld [vmem:[#allocation7 + $0x80] sm:$0xff]
          %v362 = vld [vmem:[#allocation7 + $0x88] sm:$0xff]
          %v363 = vld [vmem:[#allocation7 + $0x90] sm:$0xff]
          %v364 = vld [vmem:[#allocation7 + $0x98] sm:$0xff]
          %v365 = vld [vmem:[#allocation7 + $0xa0] sm:$0xff]
          %v366 = vld [vmem:[#allocation7 + $0xa8] sm:$0xff]
          %v367 = vld [vmem:[#allocation7 + $0xb0] sm:$0xff]
          %v368 = vld [vmem:[#allocation7 + $0xb8] sm:$0xff]
          %v369 = vld [vmem:[#allocation7 + $0xc0] sm:$0xff]
          %v370 = vld [vmem:[#allocation7 + $0xc8] sm:$0xff]
          %v371 = vld [vmem:[#allocation7 + $0xd0] sm:$0xff]
          %v372 = vld [vmem:[#allocation7 + $0xd8] sm:$0xff]
          %v373 = vld [vmem:[#allocation7 + $0xe0] sm:$0xff]
          %v374 = vld [vmem:[#allocation7 + $0xe8] sm:$0xff]
          %v375 = vld [vmem:[#allocation7 + $0xf0] sm:$0xff]
          %v376 = vld [vmem:[#allocation7 + $0xf8] sm:$0xff]
          %v377 = vld [vmem:[#allocation7 + $0x100] sm:$0xff]
          %v378 = vld [vmem:[#allocation7 + $0x108] sm:$0xff]
          %v379 = vld [vmem:[#allocation7 + $0x110] sm:$0xff]
          %v380 = vld [vmem:[#allocation7 + $0x118] sm:$0xff]
          %v381 = vld [vmem:[#allocation7 + $0x120] sm:$0xff]
          %v382 = vld [vmem:[#allocation7 + $0x128] sm:$0xff]
          %v383 = vld [vmem:[#allocation7 + $0x130] sm:$0xff]
          %v384 = vld [vmem:[#allocation7 + $0x138] sm:$0xff]
          %v385 = vld [vmem:[#allocation7 + $0x140] sm:$0xff]
          %v386 = vld [vmem:[#allocation7 + $0x148] sm:$0xff]
          %v387 = vld [vmem:[#allocation7 + $0x150] sm:$0xff]
          %v388 = vld [vmem:[#allocation7 + $0x158] sm:$0xff]
          %v389 = vld [vmem:[#allocation7 + $0x160] sm:$0xff]
          %v390 = vld [vmem:[#allocation7 + $0x168] sm:$0xff]
          %v391 = vld [vmem:[#allocation7 + $0x170] sm:$0xff]
          %v392 = vld [vmem:[#allocation7 + $0x178] sm:$0xff]
          %v393 = vld [vmem:[#allocation7 + $0x180] sm:$0xff]
          %v394 = vld [vmem:[#allocation7 + $0x188] sm:$0xff]
          %v395 = vld [vmem:[#allocation7 + $0x190] sm:$0xff]
          %v396 = vld [vmem:[#allocation7 + $0x198] sm:$0xff]
          %v397 = vld [vmem:[#allocation7 + $0x1a0] sm:$0xff]
          %v398 = vld [vmem:[#allocation7 + $0x1a8] sm:$0xff]
          %v399 = vld [vmem:[#allocation7 + $0x1b0] sm:$0xff]
          %v400 = vld [vmem:[#allocation7 + $0x1b8] sm:$0xff]
          %v401 = vld [vmem:[#allocation7 + $0x1c0] sm:$0xff]
          %v402 = vld [vmem:[#allocation7 + $0x1c8] sm:$0xff]
          %v403 = vld [vmem:[#allocation7 + $0x1d0] sm:$0xff]
          %v404 = vld [vmem:[#allocation7 + $0x1d8] sm:$0xff]
          %v405 = vld [vmem:[#allocation7 + $0x1e0] sm:$0xff]
          %v406 = vld [vmem:[#allocation7 + $0x1e8] sm:$0xff]
          %v407 = vld [vmem:[#allocation7 + $0x1f0] sm:$0xff]
          %v408 = vld [vmem:[#allocation7 + $0x1f8] sm:$0xff]
          %409 = vmatpush.msra.mxu0 %v405
          %410 = vmatpush.msra.mxu0 %v401
          %411 = vmatpush.msra.mxu0 %v397
          %412 = vmatpush.msra.mxu0 %v393
          %413 = vmatpush.msra.mxu0 %v389
          %414 = vmatpush.msra.mxu0 %v385
          %415 = vmatpush.msra.mxu0 %v381
          %416 = vmatpush.msra.mxu0 %v377
          %417 = vmatpush.msra.mxu0 %v373
          %418 = vmatpush.msra.mxu0 %v369
          %419 = vmatpush.msra.mxu0 %v365
          %420 = vmatpush.msra.mxu0 %v361
          %421 = vmatpush.msra.mxu0 %v357
          %422 = vmatpush.msra.mxu0 %v353
          %423 = vmatpush.msra.mxu0 %v349
          %424 = vmatpush.msra.mxu0 %v345
          %425 = vmatmul.f32.gmra.mxu0 %v342
          %v426 = vpop.f32.mrf.mxu0
          %v427 = vadd.f32 0.0, %v426
          %428 = vmatmul.f32.gmra.mxu0 %v343
          %v429 = vpop.f32.mrf.mxu0
          %v430 = vadd.f32 0.0, %v429
          %431 = vmatmul.f32.gmra.mxu0 %v344
          %v432 = vpop.f32.mrf.mxu0
          %v433 = vadd.f32 0.0, %v432
          %434 = vdwg.mxu0
          %435 = vmatpush.msra.mxu0 %v406
          %436 = vmatpush.msra.mxu0 %v402
          %437 = vmatpush.msra.mxu0 %v398
          %438 = vmatpush.msra.mxu0 %v394
          %439 = vmatpush.msra.mxu0 %v390
          %440 = vmatpush.msra.mxu0 %v386
          %441 = vmatpush.msra.mxu0 %v382
          %442 = vmatpush.msra.mxu0 %v378
          %443 = vmatpush.msra.mxu0 %v374
          %444 = vmatpush.msra.mxu0 %v370
          %445 = vmatpush.msra.mxu0 %v366
          %446 = vmatpush.msra.mxu0 %v362
          %447 = vmatpush.msra.mxu0 %v358
          %448 = vmatpush.msra.mxu0 %v354
          %449 = vmatpush.msra.mxu0 %v350
          %450 = vmatpush.msra.mxu0 %v346
          %451 = vmatmul.f32.gmra.mxu0 %v342
          %v452 = vpop.f32.mrf.mxu0
          %v453 = vadd.f32 0.0, %v452
          %454 = vmatmul.f32.gmra.mxu0 %v343
          %v455 = vpop.f32.mrf.mxu0
          %v456 = vadd.f32 0.0, %v455
          %457 = vmatmul.f32.gmra.mxu0 %v344
          %v458 = vpop.f32.mrf.mxu0
          %v459 = vadd.f32 0.0, %v458
          %460 = vdwg.mxu0
          %461 = vmatpush.msra.mxu0 %v407
          %462 = vmatpush.msra.mxu0 %v403
          %463 = vmatpush.msra.mxu0 %v399
          %464 = vmatpush.msra.mxu0 %v395
          %465 = vmatpush.msra.mxu0 %v391
          %466 = vmatpush.msra.mxu0 %v387
          %467 = vmatpush.msra.mxu0 %v383
          %468 = vmatpush.msra.mxu0 %v379
          %469 = vmatpush.msra.mxu0 %v375
          %470 = vmatpush.msra.mxu0 %v371
          %471 = vmatpush.msra.mxu0 %v367
          %472 = vmatpush.msra.mxu0 %v363
          %473 = vmatpush.msra.mxu0 %v359
          %474 = vmatpush.msra.mxu0 %v355
          %475 = vmatpush.msra.mxu0 %v351
          %476 = vmatpush.msra.mxu0 %v347
          %477 = vmatmul.f32.gmra.mxu0 %v342
          %v478 = vpop.f32.mrf.mxu0
          %v479 = vadd.f32 0.0, %v478
          %480 = vmatmul.f32.gmra.mxu0 %v343
          %v481 = vpop.f32.mrf.mxu0
          %v482 = vadd.f32 0.0, %v481
          %483 = vmatmul.f32.gmra.mxu0 %v344
          %v484 = vpop.f32.mrf.mxu0
          %v485 = vadd.f32 0.0, %v484
          %486 = vdwg.mxu0
          %487 = vmatpush.msra.mxu0 %v408
          %488 = vmatpush.msra.mxu0 %v404
          %489 = vmatpush.msra.mxu0 %v400
          %490 = vmatpush.msra.mxu0 %v396
          %491 = vmatpush.msra.mxu0 %v392
          %492 = vmatpush.msra.mxu0 %v388
          %493 = vmatpush.msra.mxu0 %v384
          %494 = vmatpush.msra.mxu0 %v380
          %495 = vmatpush.msra.mxu0 %v376
          %496 = vmatpush.msra.mxu0 %v372
          %497 = vmatpush.msra.mxu0 %v368
          %498 = vmatpush.msra.mxu0 %v364
          %499 = vmatpush.msra.mxu0 %v360
          %500 = vmatpush.msra.mxu0 %v356
          %501 = vmatpush.msra.mxu0 %v352
          %502 = vmatpush.msra.mxu0 %v348
          %503 = vmatmul.f32.gmra.mxu0 %v342
          %v504 = vpop.f32.mrf.mxu0
          %v505 = vadd.f32 0.0, %v504
          %506 = vmatmul.f32.gmra.mxu0 %v343
          %v507 = vpop.f32.mrf.mxu0
          %v508 = vadd.f32 0.0, %v507
          %509 = vmatmul.f32.gmra.mxu0 %v344
          %v510 = vpop.f32.mrf.mxu0
          %v511 = vadd.f32 0.0, %v510
          %512 = vdwg.mxu0
          %v513 = vld [vmem:[#allocation9] sm:$0x3]
          %v515 = vperm.slane %v513, 0
          %v516 = vperm.slane %v513, 1
          %v519 = vadd.f32 %v427, %v515
          %v520 = vadd.f32 %v453, %v516
          %v521 = vadd.f32 %v430, %v515
          %v522 = vadd.f32 %v456, %v516
          %v523 = vadd.f32 %v433, %v515
          %v524 = vadd.f32 %v459, %v516
          %v525 = vmax.f32 %v519, 0.0
          %v526 = vmax.f32 %v520, 0.0
          %v527 = vmax.f32 %v521, 0.0
          %v528 = vmax.f32 %v522, 0.0
          %v529 = vmax.f32 %v523, 0.0
          %v530 = vmax.f32 %v524, 0.0
          %531 = vst [vmem:[#allocation2] sm:$0xff] %v525
          %532 = vst [vmem:[#allocation2 + $0x8] sm:$0xff] %v526
          %533 = vst [vmem:[#allocation2 + $0x10] sm:$0xff] %v527
          %534 = vst [vmem:[#allocation2 + $0x18] sm:$0xff] %v528
          %535 = vst [vmem:[#allocation2 + $0x20] sm:$0xff] %v529
          %536 = vst [vmem:[#allocation2 + $0x28] sm:$0xff] %v530
          %537 = vst [vmem:[#allocation3] sm:$0xff] %v479
          %538 = vst [vmem:[#allocation3 + $0x8] sm:$0xff] %v505
          %539 = vst [vmem:[#allocation3 + $0x10] sm:$0xff] %v482
          %540 = vst [vmem:[#allocation3 + $0x18] sm:$0xff] %v508
          %541 = vst [vmem:[#allocation3 + $0x20] sm:$0xff] %v485
          %542 = vst [vmem:[#allocation3 + $0x28] sm:$0xff] %v511
        $region60: #{tpu_custom_call.1} parent=39 // pred_fallthru
          _
        %s543 = smul.u32 %s29, 256
        %v544 = vld [vmem:[#allocation2] sm:$0xff]
        %v545 = vld [vmem:[#allocation2 + $0x8] sm:$0xff]
        %v546 = vld [vmem:[#allocation2 + $0x10] sm:$0xff]
        %v547 = vld [vmem:[#allocation2 + $0x18] sm:$0xff]
        %v548 = vld [vmem:[#allocation2 + $0x20] sm:$0xff]
        %v549 = vld [vmem:[#allocation2 + $0x28] sm:$0xff]
        %v550 = vld [vmem:[#allocation10] sm:$0xff]
        %v551 = vld [vmem:[#allocation10 + $0x8] sm:$0xff]
        %v552 = vld [vmem:[#allocation10 + $0x10] sm:$0xff]
        %v553 = vld [vmem:[#allocation10 + $0x18] sm:$0xff]
        %v554 = vld [vmem:[#allocation10 + $0x20] sm:$0xff]
        %v555 = vld [vmem:[#allocation10 + $0x28] sm:$0xff]
        %v556 = vld [vmem:[#allocation10 + $0x30] sm:$0xff]
        %v557 = vld [vmem:[#allocation10 + $0x38] sm:$0xff]
        %v558 = vld [vmem:[#allocation10 + $0x40] sm:$0xff]
        %v559 = vld [vmem:[#allocation10 + $0x48] sm:$0xff]
        %v560 = vld [vmem:[#allocation10 + $0x50] sm:$0xff]
        %v561 = vld [vmem:[#allocation10 + $0x58] sm:$0xff]
        %v562 = vld [vmem:[#allocation10 + $0x60] sm:$0xff]
        %v563 = vld [vmem:[#allocation10 + $0x68] sm:$0xff]
        %v564 = vld [vmem:[#allocation10 + $0x70] sm:$0xff]
        %v565 = vld [vmem:[#allocation10 + $0x78] sm:$0xff]
        %v566 = vld [vmem:[#allocation10 + $0x80] sm:$0xff]
        %v567 = vld [vmem:[#allocation10 + $0x88] sm:$0xff]
        %v568 = vld [vmem:[#allocation10 + $0x90] sm:$0xff]
        %v569 = vld [vmem:[#allocation10 + $0x98] sm:$0xff]
        %v570 = vld [vmem:[#allocation10 + $0xa0] sm:$0xff]
        %v571 = vld [vmem:[#allocation10 + $0xa8] sm:$0xff]
        %v572 = vld [vmem:[#allocation10 + $0xb0] sm:$0xff]
        %v573 = vld [vmem:[#allocation10 + $0xb8] sm:$0xff]
        %v574 = vld [vmem:[#allocation10 + $0xc0] sm:$0xff]
        %v575 = vld [vmem:[#allocation10 + $0xc8] sm:$0xff]
        %v576 = vld [vmem:[#allocation10 + $0xd0] sm:$0xff]
        %v577 = vld [vmem:[#allocation10 + $0xd8] sm:$0xff]
        %v578 = vld [vmem:[#allocation10 + $0xe0] sm:$0xff]
        %v579 = vld [vmem:[#allocation10 + $0xe8] sm:$0xff]
        %v580 = vld [vmem:[#allocation10 + $0xf0] sm:$0xff]
        %v581 = vld [vmem:[#allocation10 + $0xf8] sm:$0xff]
        %v582 = vld [vmem:[#allocation10 + $0x100] sm:$0xff]
        %v583 = vld [vmem:[#allocation10 + $0x108] sm:$0xff]
        %v584 = vld [vmem:[#allocation10 + $0x110] sm:$0xff]
        %v585 = vld [vmem:[#allocation10 + $0x118] sm:$0xff]
        %v586 = vld [vmem:[#allocation10 + $0x120] sm:$0xff]
        %v587 = vld [vmem:[#allocation10 + $0x128] sm:$0xff]
        %v588 = vld [vmem:[#allocation10 + $0x130] sm:$0xff]
        %v589 = vld [vmem:[#allocation10 + $0x138] sm:$0xff]
        %v590 = vld [vmem:[#allocation10 + $0x140] sm:$0xff]
        %v591 = vld [vmem:[#allocation10 + $0x148] sm:$0xff]
        %v592 = vld [vmem:[#allocation10 + $0x150] sm:$0xff]
        %v593 = vld [vmem:[#allocation10 + $0x158] sm:$0xff]
        %v594 = vld [vmem:[#allocation10 + $0x160] sm:$0xff]
        %v595 = vld [vmem:[#allocation10 + $0x168] sm:$0xff]
        %v596 = vld [vmem:[#allocation10 + $0x170] sm:$0xff]
        %v597 = vld [vmem:[#allocation10 + $0x178] sm:$0xff]
        %v598 = vld [vmem:[#allocation10 + $0x180] sm:$0xff]
        %v599 = vld [vmem:[#allocation10 + $0x188] sm:$0xff]
        %v600 = vld [vmem:[#allocation10 + $0x190] sm:$0xff]
        %v601 = vld [vmem:[#allocation10 + $0x198] sm:$0xff]
        %v602 = vld [vmem:[#allocation10 + $0x1a0] sm:$0xff]
        %v603 = vld [vmem:[#allocation10 + $0x1a8] sm:$0xff]
        %v604 = vld [vmem:[#allocation10 + $0x1b0] sm:$0xff]
        %v605 = vld [vmem:[#allocation10 + $0x1b8] sm:$0xff]
        %v606 = vld [vmem:[#allocation10 + $0x1c0] sm:$0xff]
        %v607 = vld [vmem:[#allocation10 + $0x1c8] sm:$0xff]
        %v608 = vld [vmem:[#allocation10 + $0x1d0] sm:$0xff]
        %v609 = vld [vmem:[#allocation10 + $0x1d8] sm:$0xff]
        %v610 = vld [vmem:[#allocation10 + $0x1e0] sm:$0xff]
        %v611 = vld [vmem:[#allocation10 + $0x1e8] sm:$0xff]
        %v612 = vld [vmem:[#allocation10 + $0x1f0] sm:$0xff]
        %v613 = vld [vmem:[#allocation10 + $0x1f8] sm:$0xff]
        %s614 = sshra.s32 %s543, 7
        %s615 = sand.u32 %s543, 127
        %s616 = smul.addr %s614, 8
        %s617 = scalar_lea.vmem [#allocation3], %s616
        %v618 = vld [vmem:[%s617] sm:$0xff]
        %v619 = vld [vmem:[%s617 + $0x8] sm:$0xff]
        %v620 = vld [vmem:[%s617 + $0x10] sm:$0xff]
        %v621 = vld [vmem:[%s617 + $0x18] sm:$0xff]
        %v622 = vld [vmem:[%s617 + $0x20] sm:$0xff]
        %v623 = vld [vmem:[%s617 + $0x28] sm:$0xff]
        %624 = vmatpush.msra.mxu0 %v580
        %625 = vmatpush.msra.mxu0 %v578
        %626 = vmatpush.msra.mxu0 %v576
        %627 = vmatpush.msra.mxu0 %v574
        %628 = vmatpush.msra.mxu0 %v572
        %629 = vmatpush.msra.mxu0 %v570
        %630 = vmatpush.msra.mxu0 %v568
        %631 = vmatpush.msra.mxu0 %v566
        %632 = vmatpush.msra.mxu0 %v564
        %633 = vmatpush.msra.mxu0 %v562
        %634 = vmatpush.msra.mxu0 %v560
        %635 = vmatpush.msra.mxu0 %v558
        %636 = vmatpush.msra.mxu0 %v556
        %637 = vmatpush.msra.mxu0 %v554
        %638 = vmatpush.msra.mxu0 %v552
        %639 = vmatpush.msra.mxu0 %v550
        %640 = vmatmul.f32.gmra.mxu0 %v544
        %v641 = vpop.f32.mrf.mxu0
        %v642 = vadd.f32 %v618, %v641
        %643 = vmatmul.f32.gmra.mxu0 %v546
        %v644 = vpop.f32.mrf.mxu0
        %v645 = vadd.f32 %v620, %v644
        %646 = vmatmul.f32.gmra.mxu0 %v548
        %v647 = vpop.f32.mrf.mxu0
        %v648 = vadd.f32 %v622, %v647
        %649 = vdwg.mxu0
        %650 = vmatpush.msra.mxu0 %v612
        %651 = vmatpush.msra.mxu0 %v610
        %652 = vmatpush.msra.mxu0 %v608
        %653 = vmatpush.msra.mxu0 %v606
        %654 = vmatpush.msra.mxu0 %v604
        %655 = vmatpush.msra.mxu0 %v602
        %656 = vmatpush.msra.mxu0 %v600
        %657 = vmatpush.msra.mxu0 %v598
        %658 = vmatpush.msra.mxu0 %v596
        %659 = vmatpush.msra.mxu0 %v594
        %660 = vmatpush.msra.mxu0 %v592
        %661 = vmatpush.msra.mxu0 %v590
        %662 = vmatpush.msra.mxu0 %v588
        %663 = vmatpush.msra.mxu0 %v586
        %664 = vmatpush.msra.mxu0 %v584
        %665 = vmatpush.msra.mxu0 %v582
        %666 = vmatmul.f32.gmra.mxu0 %v545
        %v667 = vpop.f32.mrf.mxu0
        %v668 = vadd.f32 %v642, %v667
        %669 = vmatmul.f32.gmra.mxu0 %v547
        %v670 = vpop.f32.mrf.mxu0
        %v671 = vadd.f32 %v645, %v670
        %672 = vmatmul.f32.gmra.mxu0 %v549
        %v673 = vpop.f32.mrf.mxu0
        %v674 = vadd.f32 %v648, %v673
        %675 = vdwg.mxu0
        %676 = vmatpush.msra.mxu0 %v581
        %677 = vmatpush.msra.mxu0 %v579
        %678 = vmatpush.msra.mxu0 %v577
        %679 = vmatpush.msra.mxu0 %v575
        %680 = vmatpush.msra.mxu0 %v573
        %681 = vmatpush.msra.mxu0 %v571
        %682 = vmatpush.msra.mxu0 %v569
        %683 = vmatpush.msra.mxu0 %v567
        %684 = vmatpush.msra.mxu0 %v565
        %685 = vmatpush.msra.mxu0 %v563
        %686 = vmatpush.msra.mxu0 %v561
        %687 = vmatpush.msra.mxu0 %v559
        %688 = vmatpush.msra.mxu0 %v557
        %689 = vmatpush.msra.mxu0 %v555
        %690 = vmatpush.msra.mxu0 %v553
        %691 = vmatpush.msra.mxu0 %v551
        %692 = vmatmul.f32.gmra.mxu0 %v544
        %v693 = vpop.f32.mrf.mxu0
        %v694 = vadd.f32 %v619, %v693
        %695 = vmatmul.f32.gmra.mxu0 %v546
        %v696 = vpop.f32.mrf.mxu0
        %v697 = vadd.f32 %v621, %v696
        %698 = vmatmul.f32.gmra.mxu0 %v548
        %v699 = vpop.f32.mrf.mxu0
        %v700 = vadd.f32 %v623, %v699
        %701 = vdwg.mxu0
        %702 = vmatpush.msra.mxu0 %v613
        %703 = vmatpush.msra.mxu0 %v611
        %704 = vmatpush.msra.mxu0 %v609
        %705 = vmatpush.msra.mxu0 %v607
        %706 = vmatpush.msra.mxu0 %v605
        %707 = vmatpush.msra.mxu0 %v603
        %708 = vmatpush.msra.mxu0 %v601
        %709 = vmatpush.msra.mxu0 %v599
        %710 = vmatpush.msra.mxu0 %v597
        %711 = vmatpush.msra.mxu0 %v595
        %712 = vmatpush.msra.mxu0 %v593
        %713 = vmatpush.msra.mxu0 %v591
        %714 = vmatpush.msra.mxu0 %v589
        %715 = vmatpush.msra.mxu0 %v587
        %716 = vmatpush.msra.mxu0 %v585
        %717 = vmatpush.msra.mxu0 %v583
        %718 = vmatmul.f32.gmra.mxu0 %v545
        %v719 = vpop.f32.mrf.mxu0
        %v720 = vadd.f32 %v694, %v719
        %721 = vmatmul.f32.gmra.mxu0 %v547
        %v722 = vpop.f32.mrf.mxu0
        %v723 = vadd.f32 %v697, %v722
        %724 = vmatmul.f32.gmra.mxu0 %v549
        %v725 = vpop.f32.mrf.mxu0
        %v726 = vadd.f32 %v700, %v725
        %727 = vdwg.mxu0
        %v728 = vld [vmem:[%s334] sm:$0x3]
        %v730 = vperm.slane %v728, 0
        %v731 = vperm.slane %v728, 1
        %v734 = vadd.f32 %v668, %v730
        %v735 = vadd.f32 %v720, %v731
        %v736 = vadd.f32 %v671, %v730
        %v737 = vadd.f32 %v723, %v731
        %v738 = vadd.f32 %v674, %v730
        %v739 = vadd.f32 %v726, %v731
        %v740 = vmax.f32 %v734, 0.0
        %v741 = vmax.f32 %v735, 0.0
        %v742 = vmax.f32 %v736, 0.0
        %v743 = vmax.f32 %v737, 0.0
        %v744 = vmax.f32 %v738, 0.0
        %v745 = vmax.f32 %v739, 0.0
        %746 = vst [vmem:[%s328] sm:$0xff] %v740
        %747 = vst [vmem:[%s328 + $0x8] sm:$0xff] %v741
        %748 = vst [vmem:[%s328 + $0x10] sm:$0xff] %v742
        %749 = vst [vmem:[%s328 + $0x18] sm:$0xff] %v743
        %750 = vst [vmem:[%s328 + $0x20] sm:$0xff] %v744
        %751 = vst [vmem:[%s328 + $0x28] sm:$0xff] %v745
        %s752 = sand.u32 %s166, 1
        %s753 = scalar_lea.sflag [#allocation6], %s752
        %s754 = sand.u32 %s166, 1
        %s755 = smul.addr %s754, 48
        %s756 = scalar_lea.vmem [#allocation12], %s755
        // Predicated region
        $region61: #{tpu_custom_call.1} parent=39 // pred_check
          %p757 = pneg %p176
        $region62: #{tpu_custom_call.1} parent=39 // pred_check_branch
          %759 = sbr.rel (%p757) target = $region64
        $region63: #{tpu_custom_call.1} parent=39 // pred_region
          %s760 = smul.u32 3, %s28
          %s761 = smul.u32 2, %s29
          %763 = vsyncadd %s753, 0
          %s764 = smul.addr %s760, 2
          %s765 = sadd.s32 %s761, %s764
          %s766 = smul.addr %s765, 8
          %s767 = scalar_lea.hbm %s5, %s766
          %s768 = sshll.u32 %s756, 4
          %s769 = int_to_ptr.vmem [resolvable:$true] %s768
          %s770 = sshll.u32 %s767, 4
          %s771 = int_to_ptr.hbm [resolvable:$true] %s770
          %776 = dma.vmem_to_hbm [thread:$0]  %s769, 768, %s771, %s753, 256, 256, 16
        $region64: #{tpu_custom_call.1} parent=39 // pred_fallthru
          _
      $region40: #{tpu_custom_call.1} parent=5 // pred_fallthru
        _
      %p777 = scmp.le.s32.totalorder 2, %s19
      // Predicated region
      $region65: #{tpu_custom_call.1} parent=5 // pred_check
        %p778 = pneg %p777
      $region66: #{tpu_custom_call.1} parent=5 // pred_check_branch
        %780 = sbr.rel (%p778) target = $region68
      $region67: #{tpu_custom_call.1} parent=5 // pred_region
        %s781 = ssub.s32 %s19, 2
        // Predicated region
        $region69: #{tpu_custom_call.1} parent=67 // pred_check
          %p782 = pneg %p182
        $region70: #{tpu_custom_call.1} parent=67 // pred_check_branch
          %784 = sbr.rel (%p782) target = $region72
        $region71: #{tpu_custom_call.1} parent=67 // pred_region
          %s785 = sand.u32 %s167, 1
          %s786 = scalar_lea.sflag [#allocation6], %s785
          %s787 = sand.u32 %s167, 1
          %s788 = smul.addr %s787, 48
          %s789 = scalar_lea.vmem [#allocation12], %s788
          %791 = dma.done %s786, 768
        $region72: #{tpu_custom_call.1} parent=67 // pred_fallthru
          _
      $region68: #{tpu_custom_call.1} parent=5 // pred_fallthru
        _
    $region6: #{tpu_custom_call.1} parent=1 // loop_footer
      %s23 = sadd.s32 1, %s19
    $region7: #{tpu_custom_call.1} parent=1 // loop_footer_branch
      %18 = sbr.rel target = $region3
    $region8: #{tpu_custom_call.1} parent=1 // loop_exit
      _
    %792 = vsyncpa [#allocation5], 1
    %s793 = scalar_lea.sflag [#allocation5], 1
    %794 = vsyncpa %s793, 1
    %795 = vsyncpa [#allocation8], 1
    %796 = vsyncpa [#allocation11], 1
    %797 = vsyncpa [#allocation6], 1
    %s798 = scalar_lea.sflag [#allocation6], 1
    %799 = vsyncpa %s798, 1

</llo_original>
